<compile_context>
chip_gen: v7x
topology: tpu7x:2x2x1
jax: 0.10.0
libtpu: 0.0.40
codegen_flags: <defaults>
</compile_context>

<pallas_src>
import math
import functools

import jax
import jax.numpy as jnp
from jax.experimental import pallas as pl
from jax.experimental.pallas import tpu as pltpu


def _layernorm(x, w, b, eps=1e-5):
    # LayerNorm over the last dim, biased variance (unbiased=False), matching torch.
    mean = jnp.mean(x, axis=-1, keepdims=True)
    var = jnp.mean((x - mean) ** 2, axis=-1, keepdims=True)
    # rsqrt goes to the EUP slot instead of a VALU divide sequence.
    return (x - mean) * jax.lax.rsqrt(var + eps) * w + b


def _gelu_exact(x):
    # PyTorch nn.GELU() default is the exact erf form.
    return 0.5 * x * (1.0 + jax.lax.erf(x * (1.0 / math.sqrt(2.0))))


def post_norm_attention_kernel(
    x_ref, wqkv_ref, wy_ref, bqkv_ref, by_ref,
    ln1w_ref, ln1b_ref,
    w1_ref, b1_ref, w2_ref, b2_ref,
    ln2w_ref, ln2b_ref,
    o_ref,
    *, batch_block, seq_len, num_heads, head_size,
):
    L, H, hs = seq_len, num_heads, head_size
    X = x_ref[...]                       # (rows, D) f32 — kept f32 for the residual path
    D = X.shape[1]
    Xb = X.astype(jnp.bfloat16)          # bf16 MXU operands, f32 accumulation

    # ---- Fused Q/K/V projection: one (rows, D) @ (D, 3D) MXU matmul ----
    QKV = jnp.dot(Xb, wqkv_ref[...], preferred_element_type=jnp.float32) + bqkv_ref[...]
    QKVb = QKV.astype(jnp.bfloat16)      # single hoisted cast; f32 QKV dies here

    scale = 1.0 / math.sqrt(hs)
    dn = (((1,), (1,)), ((), ()))        # contract last dims: q @ k^T, no explicit transpose

    # ---- Per-head / per-sequence attention. Per-head contexts are assembled into a
    # single (rows, D) buffer (the merge_heads concat), then ONE full-width WY matmul.
    batch_ctx = []
    for b in range(batch_block):         # static loops; batch_block and H are small here
        rows_sl = slice(b * L, (b + 1) * L)
        head_ctx = []
        for h in range(H):
            q = QKVb[rows_sl, h * hs:(h + 1) * hs]                 # (L, hs) bf16 lane slices
            k = QKVb[rows_sl, D + h * hs:D + (h + 1) * hs]
            v = QKVb[rows_sl, 2 * D + h * hs:2 * D + (h + 1) * hs]
            s = jax.lax.dot_general(q, k, dn, preferred_element_type=jnp.float32) * scale
            s = s - jnp.max(s, axis=-1, keepdims=True)
            e = jnp.exp(s)
            p = e * pl.reciprocal(jnp.sum(e, axis=-1, keepdims=True), approx=True)
            head_ctx.append(jnp.dot(p.astype(jnp.bfloat16), v,
                                    preferred_element_type=jnp.float32))
        batch_ctx.append(jnp.concatenate(head_ctx, axis=-1))       # (L, D) merged heads
    ctx = batch_ctx[0] if batch_block == 1 else jnp.concatenate(batch_ctx, axis=0)

    # One full-width (rows, D) @ (D, D) output projection.
    attn_out = jnp.dot(ctx.astype(jnp.bfloat16), wy_ref[...],
                       preferred_element_type=jnp.float32) + by_ref[...]

    # ---- Post-norm 1 ----
    h1 = _layernorm(X + attn_out, ln1w_ref[...], ln1b_ref[...])

    # ---- Feed-forward (dropout is identity in eval mode) ----
    hid = jnp.dot(h1.astype(jnp.bfloat16), w1_ref[...],
                  preferred_element_type=jnp.float32) + b1_ref[...]
    hid = _gelu_exact(hid)
    mlp = jnp.dot(hid.astype(jnp.bfloat16), w2_ref[...],
                  preferred_element_type=jnp.float32) + b2_ref[...]

    # ---- Post-norm 2 ----
    out = _layernorm(mlp + h1, ln2w_ref[...], ln2b_ref[...])
    o_ref[...] = out.astype(o_ref.dtype)


def post_norm_attention_block(x, params, *, num_heads, batch_block=None):
    # TODO(synk): padding `mask` path not implemented (mask=None case only).
    B, L, D = x.shape
    head_size = D // num_heads
    HID = params["W1"].shape[1]

    # Grid collapsed: by default the whole batch is one grid step (best for the single
    # TC of v5e/v6e). Set batch_block = B // 2 on v7x so both TensorCores get a step.
    if batch_block is None:
        batch_block = B
    assert B % batch_block == 0
    n_blocks = B // batch_block
    rows = batch_block * L

    x2 = x.reshape(B * L, D).astype(jnp.float32)

    def bf16(w):
        return w.astype(jnp.bfloat16)      # wrapper-side cast: halves weight DMA

    # Pack Q/K/V weights and biases along the output dim -> one fused projection matmul.
    wqkv = jnp.concatenate([bf16(params["WQ"]), bf16(params["WK"]), bf16(params["WV"])],
                           axis=1)                                   # (D, 3D) bf16
    bqkv = jnp.concatenate([params["bQ"], params["bK"], params["bV"]], axis=1)  # (1, 3D)

    def const2d(shape):
        # Full-array block, constant index map (weights/biases resident in VMEM).
        return pl.BlockSpec(shape, lambda i: (0, 0))

    kernel = functools.partial(
        post_norm_attention_kernel,
        batch_block=batch_block, seq_len=L,
        num_heads=num_heads, head_size=head_size,
    )

    in_specs = [
        pl.BlockSpec((rows, D), lambda i: (i, 0)),      # x (rows per grid step)
        const2d((D, 3 * D)),                            # fused WQKV
        const2d((D, D)),                                # WY
        const2d((1, 3 * D)), const2d((1, D)),           # fused bQKV, bY
        const2d((1, D)), const2d((1, D)),               # ln1 w/b
        const2d((D, HID)), const2d((1, HID)),           # W1 b1
        const2d((HID, D)), const2d((1, D)),             # W2 b2
        const2d((1, D)), const2d((1, D)),               # ln2 w/b
    ]

    out2 = pl.pallas_call(
        kernel,
        out_shape=jax.ShapeDtypeStruct((B * L, D), jnp.float32),
        grid_spec=pltpu.PrefetchScalarGridSpec(
            num_scalar_prefetch=0,
            grid=(n_blocks,),
            in_specs=in_specs,
            out_specs=pl.BlockSpec((rows, D), lambda i: (i, 0)),
        ),
        compiler_params=pltpu.CompilerParams(
            dimension_semantics=("parallel",),
            vmem_limit_bytes=32 * 1024 * 1024,   # far above toy footprint; re-derive
                                                 # (<= ~48-56 MiB) for v7x at prod sizes
        ),
    )(
        x2,
        wqkv, bf16(params["WY"]),
        bqkv, params["bY"],
        params["ln1_w"], params["ln1_b"],
        bf16(params["W1"]), params["b1"], bf16(params["W2"]), params["b2"],
        params["ln2_w"], params["ln2_b"],
    )
    return out2.reshape(B, L, D)


def reference(x, params, *, num_heads):
    """Pure-JAX f32 reference mirroring the PyTorch module (eval mode)."""
    B, L, D = x.shape
    hs = D // num_heads
    Q = x @ params["WQ"] + params["bQ"]
    K = x @ params["WK"] + params["bK"]
    V = x @ params["WV"] + params["bV"]

    def split(t):
        return t.reshape(B, L, num_heads, hs).transpose(0, 2, 1, 3)

    q, k, v = split(Q), split(K), split(V)
    w = jax.nn.softmax(q @ k.transpose(0, 1, 3, 2) / math.sqrt(hs), axis=-1)
    y = (w @ v).transpose(0, 2, 1, 3).reshape(B, L, D)
    attn_out = y @ params["WY"] + params["bY"]

    def ln(t, w_, b_, eps=1e-5):
        m = jnp.mean(t, -1, keepdims=True)
        v_ = jnp.mean((t - m) ** 2, -1, keepdims=True)
        return (t - m) / jnp.sqrt(v_ + eps) * w_ + b_

    h1 = ln(x + attn_out, params["ln1_w"], params["ln1_b"])
    hid = jax.nn.gelu(h1 @ params["W1"] + params["b1"], approximate=False)
    mlp = hid @ params["W2"] + params["b2"]
    return ln(mlp + h1, params["ln2_w"], params["ln2_b"])


def init_params(key, embed_dim, hidden_dim):
    D, H = embed_dim, hidden_dim
    keys = jax.random.split(key, 8)

    def xavier(k, shape):
        limit = math.sqrt(6.0 / (shape[0] + shape[1]))
        return jax.random.uniform(k, shape, jnp.float32, -limit, limit)

    def linear_w(k, fan_in, shape):
        limit = 1.0 / math.sqrt(fan_in)
        return jax.random.uniform(k, shape, jnp.float32, -limit, limit)

    return {
        # attention projections (xavier_uniform, zero bias as in _reset_parameters)
        "WQ": xavier(keys[0], (D, D)), "WK": xavier(keys[1], (D, D)),
        "WV": xavier(keys[2], (D, D)), "WY": xavier(keys[3], (D, D)),
        "bQ": jnp.zeros((1, D), jnp.float32), "bK": jnp.zeros((1, D), jnp.float32),
        "bV": jnp.zeros((1, D), jnp.float32), "bY": jnp.zeros((1, D), jnp.float32),
        # LayerNorms: ones / zeros
        "ln1_w": jnp.ones((1, D), jnp.float32), "ln1_b": jnp.zeros((1, D), jnp.float32),
        "ln2_w": jnp.ones((1, D), jnp.float32), "ln2_b": jnp.zeros((1, D), jnp.float32),
        # MLP (stored as (in, out); deterministic synthetic init)
        "W1": linear_w(keys[4], D, (D, H)),
        "b1": linear_w(keys[5], D, (1, H)),
        "W2": linear_w(keys[6], H, (H, D)),
        "b2": linear_w(keys[7], H, (1, D)),
    }


if __name__ == "__main__":
    # Small shapes consistent with the module: batch=2, seq=8, embed=32,
    # heads=4 (head_size=8), hidden=64.
    B, L, D, NH, HID = 2, 8, 32, 4, 64

    key = jax.random.PRNGKey(0)
    kx, kp = jax.random.split(key)
    x = jax.random.normal(kx, (B, L, D), jnp.float32)
    params = init_params(kp, D, HID)

    out = post_norm_attention_block(x, params, num_heads=NH)
    out = jax.block_until_ready(out)

    ref = reference(x, params, num_heads=NH)
    assert out.shape == (B, L, D)
    # bf16 MXU operands + approx reciprocal -> looser tolerance than pure-f32.
    max_err = float(jnp.max(jnp.abs(out - ref)))
    assert jnp.allclose(out, ref, atol=6e-2, rtol=6e-2), max_err
    print("KERNEL_OK")
</pallas_src>

<mosaic_0001>
module attributes {stable_mosaic.version = 11 : i64} {
  func.func @post_norm_attention_kernel(%arg0: i32, %arg1: memref<16x32xf32, #tpu.memory_space<vmem>>, %arg2: memref<32x96xbf16, #tpu.memory_space<vmem>>, %arg3: memref<32x32xbf16, #tpu.memory_space<vmem>>, %arg4: memref<1x96xf32, #tpu.memory_space<vmem>>, %arg5: memref<1x32xf32, #tpu.memory_space<vmem>>, %arg6: memref<1x32xf32, #tpu.memory_space<vmem>>, %arg7: memref<1x32xf32, #tpu.memory_space<vmem>>, %arg8: memref<32x64xbf16, #tpu.memory_space<vmem>>, %arg9: memref<1x64xf32, #tpu.memory_space<vmem>>, %arg10: memref<64x32xbf16, #tpu.memory_space<vmem>>, %arg11: memref<1x32xf32, #tpu.memory_space<vmem>>, %arg12: memref<1x32xf32, #tpu.memory_space<vmem>>, %arg13: memref<1x32xf32, #tpu.memory_space<vmem>>, %arg14: memref<16x32xf32, #tpu.memory_space<vmem>>) attributes {dimension_semantics = [#tpu.dimension_semantics<parallel>], iteration_bounds = array<i64: 1>, scalar_prefetch = 0 : i64, scratch_operands = 0 : i64, tpu.core_type = #tpu.core_type<tc>, window_params = [{transform_indices = @transform_0, window_bounds = array<i64: 16, 32>}, {pipeline_mode = #tpu.pipeline_mode<synchronous>, transform_indices = @transform_1, window_bounds = array<i64: 32, 96>}, {pipeline_mode = #tpu.pipeline_mode<synchronous>, transform_indices = @transform_2, window_bounds = array<i64: 32, 32>}, {pipeline_mode = #tpu.pipeline_mode<synchronous>, transform_indices = @transform_3, window_bounds = array<i64: 1, 96>}, {pipeline_mode = #tpu.pipeline_mode<synchronous>, transform_indices = @transform_4, window_bounds = array<i64: 1, 32>}, {pipeline_mode = #tpu.pipeline_mode<synchronous>, transform_indices = @transform_5, window_bounds = array<i64: 1, 32>}, {pipeline_mode = #tpu.pipeline_mode<synchronous>, transform_indices = @transform_6, window_bounds = array<i64: 1, 32>}, {pipeline_mode = #tpu.pipeline_mode<synchronous>, transform_indices = @transform_7, window_bounds = array<i64: 32, 64>}, {pipeline_mode = #tpu.pipeline_mode<synchronous>, transform_indices = @transform_8, window_bounds = array<i64: 1, 64>}, {pipeline_mode = #tpu.pipeline_mode<synchronous>, transform_indices = @transform_9, window_bounds = array<i64: 64, 32>}, {pipeline_mode = #tpu.pipeline_mode<synchronous>, transform_indices = @transform_10, window_bounds = array<i64: 1, 32>}, {pipeline_mode = #tpu.pipeline_mode<synchronous>, transform_indices = @transform_11, window_bounds = array<i64: 1, 32>}, {pipeline_mode = #tpu.pipeline_mode<synchronous>, transform_indices = @transform_12, window_bounds = array<i64: 1, 32>}, {transform_indices = @transform_13, window_bounds = array<i64: 16, 32>}]} {
    %c0 = arith.constant 0 : index
    %c0_0 = arith.constant 0 : index
    %0 = vector.load %arg1[%c0, %c0_0] : memref<16x32xf32, #tpu.memory_space<vmem>>, vector<16x32xf32>
    %1 = arith.truncf %0 : vector<16x32xf32> to vector<16x32xbf16>
    %c0_1 = arith.constant 0 : index
    %c0_2 = arith.constant 0 : index
    %2 = vector.load %arg2[%c0_1, %c0_2] : memref<32x96xbf16, #tpu.memory_space<vmem>>, vector<32x96xbf16>
    %cst = arith.constant dense<0.000000e+00> : vector<16x96xf32>
    %3 = tpu.matmul %1, %2, %cst {dimension_numbers = #tpu.dot_dimension_numbers<[1], [0], [0], [1], [0, 0, 1, 1], [], []>} : vector<16x32xbf16>, vector<32x96xbf16>, vector<16x96xf32> -> vector<16x96xf32>
    %c0_3 = arith.constant 0 : index
    %c0_4 = arith.constant 0 : index
    %4 = vector.load %arg4[%c0_3, %c0_4] : memref<1x96xf32, #tpu.memory_space<vmem>>, vector<1x96xf32>
    %5 = vector.broadcast %4 : vector<1x96xf32> to vector<16x96xf32>
    %6 = arith.addf %3, %5 : vector<16x96xf32>
    %7 = arith.truncf %6 : vector<16x96xf32> to vector<16x96xbf16>
    %8 = vector.extract_strided_slice %7 {offsets = [0, 0], sizes = [8, 8], strides = [1, 1]} : vector<16x96xbf16> to vector<8x8xbf16>
    %9 = vector.extract_strided_slice %7 {offsets = [0, 32], sizes = [8, 8], strides = [1, 1]} : vector<16x96xbf16> to vector<8x8xbf16>
    %10 = vector.extract_strided_slice %7 {offsets = [0, 64], sizes = [8, 8], strides = [1, 1]} : vector<16x96xbf16> to vector<8x8xbf16>
    %cst_5 = arith.constant dense<0.000000e+00> : vector<8x8xf32>
    %11 = tpu.matmul %8, %9, %cst_5 {dimension_numbers = #tpu.dot_dimension_numbers<[1], [1], [0], [0], [0, 0, 1, 0], [], []>} : vector<8x8xbf16>, vector<8x8xbf16>, vector<8x8xf32> -> vector<8x8xf32>
    %cst_6 = arith.constant 0.353553385 : f32
    %12 = vector.broadcast %cst_6 : f32 to vector<8x8xf32>
    %13 = arith.mulf %11, %12 : vector<8x8xf32>
    %cst_7 = arith.constant dense<0xFF800000> : vector<8xf32>
    %14 = vector.multi_reduction <maximumf>, %13, %cst_7 [1] : vector<8x8xf32> to vector<8xf32>
    %15 = vector.shape_cast %14 : vector<8xf32> to vector<8x1xf32>
    %16 = vector.broadcast %15 : vector<8x1xf32> to vector<8x8xf32>
    %17 = arith.subf %13, %16 : vector<8x8xf32>
    %18 = math.exp %17 : vector<8x8xf32>
    %cst_8 = arith.constant dense<0.000000e+00> : vector<8xf32>
    %19 = vector.multi_reduction <add>, %18, %cst_8 [1] : vector<8x8xf32> to vector<8xf32>
    %20 = vector.shape_cast %19 : vector<8xf32> to vector<8x1xf32>
    %21 = tpu.reciprocal %20 {approx = true} : vector<8x1xf32> -> vector<8x1xf32>
    %22 = vector.broadcast %21 : vector<8x1xf32> to vector<8x8xf32>
    %23 = arith.mulf %18, %22 : vector<8x8xf32>
    %24 = arith.truncf %23 : vector<8x8xf32> to vector<8x8xbf16>
    %cst_9 = arith.constant dense<0.000000e+00> : vector<8x8xf32>
    %25 = tpu.matmul %24, %10, %cst_9 {dimension_numbers = #tpu.dot_dimension_numbers<[1], [0], [0], [1], [0, 0, 1, 1], [], []>} : vector<8x8xbf16>, vector<8x8xbf16>, vector<8x8xf32> -> vector<8x8xf32>
    %26 = vector.extract_strided_slice %7 {offsets = [0, 8], sizes = [8, 8], strides = [1, 1]} : vector<16x96xbf16> to vector<8x8xbf16>
    %27 = vector.extract_strided_slice %7 {offsets = [0, 40], sizes = [8, 8], strides = [1, 1]} : vector<16x96xbf16> to vector<8x8xbf16>
    %28 = vector.extract_strided_slice %7 {offsets = [0, 72], sizes = [8, 8], strides = [1, 1]} : vector<16x96xbf16> to vector<8x8xbf16>
    %cst_10 = arith.constant dense<0.000000e+00> : vector<8x8xf32>
    %29 = tpu.matmul %26, %27, %cst_10 {dimension_numbers = #tpu.dot_dimension_numbers<[1], [1], [0], [0], [0, 0, 1, 0], [], []>} : vector<8x8xbf16>, vector<8x8xbf16>, vector<8x8xf32> -> vector<8x8xf32>
    %cst_11 = arith.constant 0.353553385 : f32
    %30 = vector.broadcast %cst_11 : f32 to vector<8x8xf32>
    %31 = arith.mulf %29, %30 : vector<8x8xf32>
    %cst_12 = arith.constant dense<0xFF800000> : vector<8xf32>
    %32 = vector.multi_reduction <maximumf>, %31, %cst_12 [1] : vector<8x8xf32> to vector<8xf32>
    %33 = vector.shape_cast %32 : vector<8xf32> to vector<8x1xf32>
    %34 = vector.broadcast %33 : vector<8x1xf32> to vector<8x8xf32>
    %35 = arith.subf %31, %34 : vector<8x8xf32>
    %36 = math.exp %35 : vector<8x8xf32>
    %cst_13 = arith.constant dense<0.000000e+00> : vector<8xf32>
    %37 = vector.multi_reduction <add>, %36, %cst_13 [1] : vector<8x8xf32> to vector<8xf32>
    %38 = vector.shape_cast %37 : vector<8xf32> to vector<8x1xf32>
    %39 = tpu.reciprocal %38 {approx = true} : vector<8x1xf32> -> vector<8x1xf32>
    %40 = vector.broadcast %39 : vector<8x1xf32> to vector<8x8xf32>
    %41 = arith.mulf %36, %40 : vector<8x8xf32>
    %42 = arith.truncf %41 : vector<8x8xf32> to vector<8x8xbf16>
    %cst_14 = arith.constant dense<0.000000e+00> : vector<8x8xf32>
    %43 = tpu.matmul %42, %28, %cst_14 {dimension_numbers = #tpu.dot_dimension_numbers<[1], [0], [0], [1], [0, 0, 1, 1], [], []>} : vector<8x8xbf16>, vector<8x8xbf16>, vector<8x8xf32> -> vector<8x8xf32>
    %44 = vector.extract_strided_slice %7 {offsets = [0, 16], sizes = [8, 8], strides = [1, 1]} : vector<16x96xbf16> to vector<8x8xbf16>
    %45 = vector.extract_strided_slice %7 {offsets = [0, 48], sizes = [8, 8], strides = [1, 1]} : vector<16x96xbf16> to vector<8x8xbf16>
    %46 = vector.extract_strided_slice %7 {offsets = [0, 80], sizes = [8, 8], strides = [1, 1]} : vector<16x96xbf16> to vector<8x8xbf16>
    %cst_15 = arith.constant dense<0.000000e+00> : vector<8x8xf32>
    %47 = tpu.matmul %44, %45, %cst_15 {dimension_numbers = #tpu.dot_dimension_numbers<[1], [1], [0], [0], [0, 0, 1, 0], [], []>} : vector<8x8xbf16>, vector<8x8xbf16>, vector<8x8xf32> -> vector<8x8xf32>
    %cst_16 = arith.constant 0.353553385 : f32
    %48 = vector.broadcast %cst_16 : f32 to vector<8x8xf32>
    %49 = arith.mulf %47, %48 : vector<8x8xf32>
    %cst_17 = arith.constant dense<0xFF800000> : vector<8xf32>
    %50 = vector.multi_reduction <maximumf>, %49, %cst_17 [1] : vector<8x8xf32> to vector<8xf32>
    %51 = vector.shape_cast %50 : vector<8xf32> to vector<8x1xf32>
    %52 = vector.broadcast %51 : vector<8x1xf32> to vector<8x8xf32>
    %53 = arith.subf %49, %52 : vector<8x8xf32>
    %54 = math.exp %53 : vector<8x8xf32>
    %cst_18 = arith.constant dense<0.000000e+00> : vector<8xf32>
    %55 = vector.multi_reduction <add>, %54, %cst_18 [1] : vector<8x8xf32> to vector<8xf32>
    %56 = vector.shape_cast %55 : vector<8xf32> to vector<8x1xf32>
    %57 = tpu.reciprocal %56 {approx = true} : vector<8x1xf32> -> vector<8x1xf32>
    %58 = vector.broadcast %57 : vector<8x1xf32> to vector<8x8xf32>
    %59 = arith.mulf %54, %58 : vector<8x8xf32>
    %60 = arith.truncf %59 : vector<8x8xf32> to vector<8x8xbf16>
    %cst_19 = arith.constant dense<0.000000e+00> : vector<8x8xf32>
    %61 = tpu.matmul %60, %46, %cst_19 {dimension_numbers = #tpu.dot_dimension_numbers<[1], [0], [0], [1], [0, 0, 1, 1], [], []>} : vector<8x8xbf16>, vector<8x8xbf16>, vector<8x8xf32> -> vector<8x8xf32>
    %62 = vector.extract_strided_slice %7 {offsets = [0, 24], sizes = [8, 8], strides = [1, 1]} : vector<16x96xbf16> to vector<8x8xbf16>
    %63 = vector.extract_strided_slice %7 {offsets = [0, 56], sizes = [8, 8], strides = [1, 1]} : vector<16x96xbf16> to vector<8x8xbf16>
    %64 = vector.extract_strided_slice %7 {offsets = [0, 88], sizes = [8, 8], strides = [1, 1]} : vector<16x96xbf16> to vector<8x8xbf16>
    %cst_20 = arith.constant dense<0.000000e+00> : vector<8x8xf32>
    %65 = tpu.matmul %62, %63, %cst_20 {dimension_numbers = #tpu.dot_dimension_numbers<[1], [1], [0], [0], [0, 0, 1, 0], [], []>} : vector<8x8xbf16>, vector<8x8xbf16>, vector<8x8xf32> -> vector<8x8xf32>
    %cst_21 = arith.constant 0.353553385 : f32
    %66 = vector.broadcast %cst_21 : f32 to vector<8x8xf32>
    %67 = arith.mulf %65, %66 : vector<8x8xf32>
    %cst_22 = arith.constant dense<0xFF800000> : vector<8xf32>
    %68 = vector.multi_reduction <maximumf>, %67, %cst_22 [1] : vector<8x8xf32> to vector<8xf32>
    %69 = vector.shape_cast %68 : vector<8xf32> to vector<8x1xf32>
    %70 = vector.broadcast %69 : vector<8x1xf32> to vector<8x8xf32>
    %71 = arith.subf %67, %70 : vector<8x8xf32>
    %72 = math.exp %71 : vector<8x8xf32>
    %cst_23 = arith.constant dense<0.000000e+00> : vector<8xf32>
    %73 = vector.multi_reduction <add>, %72, %cst_23 [1] : vector<8x8xf32> to vector<8xf32>
    %74 = vector.shape_cast %73 : vector<8xf32> to vector<8x1xf32>
    %75 = tpu.reciprocal %74 {approx = true} : vector<8x1xf32> -> vector<8x1xf32>
    %76 = vector.broadcast %75 : vector<8x1xf32> to vector<8x8xf32>
    %77 = arith.mulf %72, %76 : vector<8x8xf32>
    %78 = arith.truncf %77 : vector<8x8xf32> to vector<8x8xbf16>
    %cst_24 = arith.constant dense<0.000000e+00> : vector<8x8xf32>
    %79 = tpu.matmul %78, %64, %cst_24 {dimension_numbers = #tpu.dot_dimension_numbers<[1], [0], [0], [1], [0, 0, 1, 1], [], []>} : vector<8x8xbf16>, vector<8x8xbf16>, vector<8x8xf32> -> vector<8x8xf32>
    %80 = tpu.concatenate %25, %43, %61, %79 in 1 : vector<8x8xf32>, vector<8x8xf32>, vector<8x8xf32>, vector<8x8xf32> -> vector<8x32xf32>
    %81 = vector.extract_strided_slice %7 {offsets = [8, 0], sizes = [8, 8], strides = [1, 1]} : vector<16x96xbf16> to vector<8x8xbf16>
    %82 = vector.extract_strided_slice %7 {offsets = [8, 32], sizes = [8, 8], strides = [1, 1]} : vector<16x96xbf16> to vector<8x8xbf16>
    %83 = vector.extract_strided_slice %7 {offsets = [8, 64], sizes = [8, 8], strides = [1, 1]} : vector<16x96xbf16> to vector<8x8xbf16>
    %cst_25 = arith.constant dense<0.000000e+00> : vector<8x8xf32>
    %84 = tpu.matmul %81, %82, %cst_25 {dimension_numbers = #tpu.dot_dimension_numbers<[1], [1], [0], [0], [0, 0, 1, 0], [], []>} : vector<8x8xbf16>, vector<8x8xbf16>, vector<8x8xf32> -> vector<8x8xf32>
    %cst_26 = arith.constant 0.353553385 : f32
    %85 = vector.broadcast %cst_26 : f32 to vector<8x8xf32>
    %86 = arith.mulf %84, %85 : vector<8x8xf32>
    %cst_27 = arith.constant dense<0xFF800000> : vector<8xf32>
    %87 = vector.multi_reduction <maximumf>, %86, %cst_27 [1] : vector<8x8xf32> to vector<8xf32>
    %88 = vector.shape_cast %87 : vector<8xf32> to vector<8x1xf32>
    %89 = vector.broadcast %88 : vector<8x1xf32> to vector<8x8xf32>
    %90 = arith.subf %86, %89 : vector<8x8xf32>
    %91 = math.exp %90 : vector<8x8xf32>
    %cst_28 = arith.constant dense<0.000000e+00> : vector<8xf32>
    %92 = vector.multi_reduction <add>, %91, %cst_28 [1] : vector<8x8xf32> to vector<8xf32>
    %93 = vector.shape_cast %92 : vector<8xf32> to vector<8x1xf32>
    %94 = tpu.reciprocal %93 {approx = true} : vector<8x1xf32> -> vector<8x1xf32>
    %95 = vector.broadcast %94 : vector<8x1xf32> to vector<8x8xf32>
    %96 = arith.mulf %91, %95 : vector<8x8xf32>
    %97 = arith.truncf %96 : vector<8x8xf32> to vector<8x8xbf16>
    %cst_29 = arith.constant dense<0.000000e+00> : vector<8x8xf32>
    %98 = tpu.matmul %97, %83, %cst_29 {dimension_numbers = #tpu.dot_dimension_numbers<[1], [0], [0], [1], [0, 0, 1, 1], [], []>} : vector<8x8xbf16>, vector<8x8xbf16>, vector<8x8xf32> -> vector<8x8xf32>
    %99 = vector.extract_strided_slice %7 {offsets = [8, 8], sizes = [8, 8], strides = [1, 1]} : vector<16x96xbf16> to vector<8x8xbf16>
    %100 = vector.extract_strided_slice %7 {offsets = [8, 40], sizes = [8, 8], strides = [1, 1]} : vector<16x96xbf16> to vector<8x8xbf16>
    %101 = vector.extract_strided_slice %7 {offsets = [8, 72], sizes = [8, 8], strides = [1, 1]} : vector<16x96xbf16> to vector<8x8xbf16>
    %cst_30 = arith.constant dense<0.000000e+00> : vector<8x8xf32>
    %102 = tpu.matmul %99, %100, %cst_30 {dimension_numbers = #tpu.dot_dimension_numbers<[1], [1], [0], [0], [0, 0, 1, 0], [], []>} : vector<8x8xbf16>, vector<8x8xbf16>, vector<8x8xf32> -> vector<8x8xf32>
    %cst_31 = arith.constant 0.353553385 : f32
    %103 = vector.broadcast %cst_31 : f32 to vector<8x8xf32>
    %104 = arith.mulf %102, %103 : vector<8x8xf32>
    %cst_32 = arith.constant dense<0xFF800000> : vector<8xf32>
    %105 = vector.multi_reduction <maximumf>, %104, %cst_32 [1] : vector<8x8xf32> to vector<8xf32>
    %106 = vector.shape_cast %105 : vector<8xf32> to vector<8x1xf32>
    %107 = vector.broadcast %106 : vector<8x1xf32> to vector<8x8xf32>
    %108 = arith.subf %104, %107 : vector<8x8xf32>
    %109 = math.exp %108 : vector<8x8xf32>
    %cst_33 = arith.constant dense<0.000000e+00> : vector<8xf32>
    %110 = vector.multi_reduction <add>, %109, %cst_33 [1] : vector<8x8xf32> to vector<8xf32>
    %111 = vector.shape_cast %110 : vector<8xf32> to vector<8x1xf32>
    %112 = tpu.reciprocal %111 {approx = true} : vector<8x1xf32> -> vector<8x1xf32>
    %113 = vector.broadcast %112 : vector<8x1xf32> to vector<8x8xf32>
    %114 = arith.mulf %109, %113 : vector<8x8xf32>
    %115 = arith.truncf %114 : vector<8x8xf32> to vector<8x8xbf16>
    %cst_34 = arith.constant dense<0.000000e+00> : vector<8x8xf32>
    %116 = tpu.matmul %115, %101, %cst_34 {dimension_numbers = #tpu.dot_dimension_numbers<[1], [0], [0], [1], [0, 0, 1, 1], [], []>} : vector<8x8xbf16>, vector<8x8xbf16>, vector<8x8xf32> -> vector<8x8xf32>
    %117 = vector.extract_strided_slice %7 {offsets = [8, 16], sizes = [8, 8], strides = [1, 1]} : vector<16x96xbf16> to vector<8x8xbf16>
    %118 = vector.extract_strided_slice %7 {offsets = [8, 48], sizes = [8, 8], strides = [1, 1]} : vector<16x96xbf16> to vector<8x8xbf16>
    %119 = vector.extract_strided_slice %7 {offsets = [8, 80], sizes = [8, 8], strides = [1, 1]} : vector<16x96xbf16> to vector<8x8xbf16>
    %cst_35 = arith.constant dense<0.000000e+00> : vector<8x8xf32>
    %120 = tpu.matmul %117, %118, %cst_35 {dimension_numbers = #tpu.dot_dimension_numbers<[1], [1], [0], [0], [0, 0, 1, 0], [], []>} : vector<8x8xbf16>, vector<8x8xbf16>, vector<8x8xf32> -> vector<8x8xf32>
    %cst_36 = arith.constant 0.353553385 : f32
    %121 = vector.broadcast %cst_36 : f32 to vector<8x8xf32>
    %122 = arith.mulf %120, %121 : vector<8x8xf32>
    %cst_37 = arith.constant dense<0xFF800000> : vector<8xf32>
    %123 = vector.multi_reduction <maximumf>, %122, %cst_37 [1] : vector<8x8xf32> to vector<8xf32>
    %124 = vector.shape_cast %123 : vector<8xf32> to vector<8x1xf32>
    %125 = vector.broadcast %124 : vector<8x1xf32> to vector<8x8xf32>
    %126 = arith.subf %122, %125 : vector<8x8xf32>
    %127 = math.exp %126 : vector<8x8xf32>
    %cst_38 = arith.constant dense<0.000000e+00> : vector<8xf32>
    %128 = vector.multi_reduction <add>, %127, %cst_38 [1] : vector<8x8xf32> to vector<8xf32>
    %129 = vector.shape_cast %128 : vector<8xf32> to vector<8x1xf32>
    %130 = tpu.reciprocal %129 {approx = true} : vector<8x1xf32> -> vector<8x1xf32>
    %131 = vector.broadcast %130 : vector<8x1xf32> to vector<8x8xf32>
    %132 = arith.mulf %127, %131 : vector<8x8xf32>
    %133 = arith.truncf %132 : vector<8x8xf32> to vector<8x8xbf16>
    %cst_39 = arith.constant dense<0.000000e+00> : vector<8x8xf32>
    %134 = tpu.matmul %133, %119, %cst_39 {dimension_numbers = #tpu.dot_dimension_numbers<[1], [0], [0], [1], [0, 0, 1, 1], [], []>} : vector<8x8xbf16>, vector<8x8xbf16>, vector<8x8xf32> -> vector<8x8xf32>
    %135 = vector.extract_strided_slice %7 {offsets = [8, 24], sizes = [8, 8], strides = [1, 1]} : vector<16x96xbf16> to vector<8x8xbf16>
    %136 = vector.extract_strided_slice %7 {offsets = [8, 56], sizes = [8, 8], strides = [1, 1]} : vector<16x96xbf16> to vector<8x8xbf16>
    %137 = vector.extract_strided_slice %7 {offsets = [8, 88], sizes = [8, 8], strides = [1, 1]} : vector<16x96xbf16> to vector<8x8xbf16>
    %cst_40 = arith.constant dense<0.000000e+00> : vector<8x8xf32>
    %138 = tpu.matmul %135, %136, %cst_40 {dimension_numbers = #tpu.dot_dimension_numbers<[1], [1], [0], [0], [0, 0, 1, 0], [], []>} : vector<8x8xbf16>, vector<8x8xbf16>, vector<8x8xf32> -> vector<8x8xf32>
    %cst_41 = arith.constant 0.353553385 : f32
    %139 = vector.broadcast %cst_41 : f32 to vector<8x8xf32>
    %140 = arith.mulf %138, %139 : vector<8x8xf32>
    %cst_42 = arith.constant dense<0xFF800000> : vector<8xf32>
    %141 = vector.multi_reduction <maximumf>, %140, %cst_42 [1] : vector<8x8xf32> to vector<8xf32>
    %142 = vector.shape_cast %141 : vector<8xf32> to vector<8x1xf32>
    %143 = vector.broadcast %142 : vector<8x1xf32> to vector<8x8xf32>
    %144 = arith.subf %140, %143 : vector<8x8xf32>
    %145 = math.exp %144 : vector<8x8xf32>
    %cst_43 = arith.constant dense<0.000000e+00> : vector<8xf32>
    %146 = vector.multi_reduction <add>, %145, %cst_43 [1] : vector<8x8xf32> to vector<8xf32>
    %147 = vector.shape_cast %146 : vector<8xf32> to vector<8x1xf32>
    %148 = tpu.reciprocal %147 {approx = true} : vector<8x1xf32> -> vector<8x1xf32>
    %149 = vector.broadcast %148 : vector<8x1xf32> to vector<8x8xf32>
    %150 = arith.mulf %145, %149 : vector<8x8xf32>
    %151 = arith.truncf %150 : vector<8x8xf32> to vector<8x8xbf16>
    %cst_44 = arith.constant dense<0.000000e+00> : vector<8x8xf32>
    %152 = tpu.matmul %151, %137, %cst_44 {dimension_numbers = #tpu.dot_dimension_numbers<[1], [0], [0], [1], [0, 0, 1, 1], [], []>} : vector<8x8xbf16>, vector<8x8xbf16>, vector<8x8xf32> -> vector<8x8xf32>
    %153 = tpu.concatenate %98, %116, %134, %152 in 1 : vector<8x8xf32>, vector<8x8xf32>, vector<8x8xf32>, vector<8x8xf32> -> vector<8x32xf32>
    %154 = tpu.concatenate %80, %153 in 0 : vector<8x32xf32>, vector<8x32xf32> -> vector<16x32xf32>
    %155 = arith.truncf %154 : vector<16x32xf32> to vector<16x32xbf16>
    %c0_45 = arith.constant 0 : index
    %c0_46 = arith.constant 0 : index
    %156 = vector.load %arg3[%c0_45, %c0_46] : memref<32x32xbf16, #tpu.memory_space<vmem>>, vector<32x32xbf16>
    %cst_47 = arith.constant dense<0.000000e+00> : vector<16x32xf32>
    %157 = tpu.matmul %155, %156, %cst_47 {dimension_numbers = #tpu.dot_dimension_numbers<[1], [0], [0], [1], [0, 0, 1, 1], [], []>} : vector<16x32xbf16>, vector<32x32xbf16>, vector<16x32xf32> -> vector<16x32xf32>
    %c0_48 = arith.constant 0 : index
    %c0_49 = arith.constant 0 : index
    %158 = vector.load %arg5[%c0_48, %c0_49] : memref<1x32xf32, #tpu.memory_space<vmem>>, vector<1x32xf32>
    %159 = vector.broadcast %158 : vector<1x32xf32> to vector<16x32xf32>
    %160 = arith.addf %157, %159 : vector<16x32xf32>
    %161 = arith.addf %0, %160 : vector<16x32xf32>
    %c0_50 = arith.constant 0 : index
    %c0_51 = arith.constant 0 : index
    %162 = vector.load %arg6[%c0_50, %c0_51] : memref<1x32xf32, #tpu.memory_space<vmem>>, vector<1x32xf32>
    %c0_52 = arith.constant 0 : index
    %c0_53 = arith.constant 0 : index
    %163 = vector.load %arg7[%c0_52, %c0_53] : memref<1x32xf32, #tpu.memory_space<vmem>>, vector<1x32xf32>
    %cst_54 = arith.constant dense<0.000000e+00> : vector<16xf32>
    %164 = vector.multi_reduction <add>, %161, %cst_54 [1] : vector<16x32xf32> to vector<16xf32>
    %165 = vector.shape_cast %164 : vector<16xf32> to vector<16x1xf32>
    %cst_55 = arith.constant 3.200000e+01 : f32
    %166 = vector.broadcast %cst_55 : f32 to vector<16x1xf32>
    %167 = arith.divf %165, %166 : vector<16x1xf32>
    %168 = vector.broadcast %167 : vector<16x1xf32> to vector<16x32xf32>
    %169 = arith.subf %161, %168 : vector<16x32xf32>
    %170 = arith.mulf %169, %169 : vector<16x32xf32>
    %cst_56 = arith.constant dense<0.000000e+00> : vector<16xf32>
    %171 = vector.multi_reduction <add>, %170, %cst_56 [1] : vector<16x32xf32> to vector<16xf32>
    %172 = vector.shape_cast %171 : vector<16xf32> to vector<16x1xf32>
    %cst_57 = arith.constant 3.200000e+01 : f32
    %173 = vector.broadcast %cst_57 : f32 to vector<16x1xf32>
    %174 = arith.divf %172, %173 : vector<16x1xf32>
    %175 = vector.broadcast %167 : vector<16x1xf32> to vector<16x32xf32>
    %176 = arith.subf %161, %175 : vector<16x32xf32>
    %cst_58 = arith.constant 9.99999974E-6 : f32
    %177 = vector.broadcast %cst_58 : f32 to vector<16x1xf32>
    %178 = arith.addf %174, %177 : vector<16x1xf32>
    %179 = math.rsqrt %178 : vector<16x1xf32>
    %180 = vector.broadcast %179 : vector<16x1xf32> to vector<16x32xf32>
    %181 = arith.mulf %176, %180 : vector<16x32xf32>
    %182 = vector.broadcast %162 : vector<1x32xf32> to vector<16x32xf32>
    %183 = arith.mulf %181, %182 : vector<16x32xf32>
    %184 = vector.broadcast %163 : vector<1x32xf32> to vector<16x32xf32>
    %185 = arith.addf %183, %184 : vector<16x32xf32>
    %186 = arith.truncf %185 : vector<16x32xf32> to vector<16x32xbf16>
    %c0_59 = arith.constant 0 : index
    %c0_60 = arith.constant 0 : index
    %187 = vector.load %arg8[%c0_59, %c0_60] : memref<32x64xbf16, #tpu.memory_space<vmem>>, vector<32x64xbf16>
    %cst_61 = arith.constant dense<0.000000e+00> : vector<16x64xf32>
    %188 = tpu.matmul %186, %187, %cst_61 {dimension_numbers = #tpu.dot_dimension_numbers<[1], [0], [0], [1], [0, 0, 1, 1], [], []>} : vector<16x32xbf16>, vector<32x64xbf16>, vector<16x64xf32> -> vector<16x64xf32>
    %c0_62 = arith.constant 0 : index
    %c0_63 = arith.constant 0 : index
    %189 = vector.load %arg9[%c0_62, %c0_63] : memref<1x64xf32, #tpu.memory_space<vmem>>, vector<1x64xf32>
    %190 = vector.broadcast %189 : vector<1x64xf32> to vector<16x64xf32>
    %191 = arith.addf %188, %190 : vector<16x64xf32>
    %cst_64 = arith.constant 5.000000e-01 : f32
    %192 = vector.broadcast %cst_64 : f32 to vector<16x64xf32>
    %193 = arith.mulf %192, %191 : vector<16x64xf32>
    %cst_65 = arith.constant 0.707106769 : f32
    %194 = vector.broadcast %cst_65 : f32 to vector<16x64xf32>
    %195 = arith.mulf %191, %194 : vector<16x64xf32>
    %196 = math.erf %195 : vector<16x64xf32>
    %cst_66 = arith.constant 1.000000e+00 : f32
    %197 = vector.broadcast %cst_66 : f32 to vector<16x64xf32>
    %198 = arith.addf %197, %196 : vector<16x64xf32>
    %199 = arith.mulf %193, %198 : vector<16x64xf32>
    %200 = arith.truncf %199 : vector<16x64xf32> to vector<16x64xbf16>
    %c0_67 = arith.constant 0 : index
    %c0_68 = arith.constant 0 : index
    %201 = vector.load %arg10[%c0_67, %c0_68] : memref<64x32xbf16, #tpu.memory_space<vmem>>, vector<64x32xbf16>
    %cst_69 = arith.constant dense<0.000000e+00> : vector<16x32xf32>
    %202 = tpu.matmul %200, %201, %cst_69 {dimension_numbers = #tpu.dot_dimension_numbers<[1], [0], [0], [1], [0, 0, 1, 1], [], []>} : vector<16x64xbf16>, vector<64x32xbf16>, vector<16x32xf32> -> vector<16x32xf32>
    %c0_70 = arith.constant 0 : index
    %c0_71 = arith.constant 0 : index
    %203 = vector.load %arg11[%c0_70, %c0_71] : memref<1x32xf32, #tpu.memory_space<vmem>>, vector<1x32xf32>
    %204 = vector.broadcast %203 : vector<1x32xf32> to vector<16x32xf32>
    %205 = arith.addf %202, %204 : vector<16x32xf32>
    %206 = arith.addf %205, %185 : vector<16x32xf32>
    %c0_72 = arith.constant 0 : index
    %c0_73 = arith.constant 0 : index
    %207 = vector.load %arg12[%c0_72, %c0_73] : memref<1x32xf32, #tpu.memory_space<vmem>>, vector<1x32xf32>
    %c0_74 = arith.constant 0 : index
    %c0_75 = arith.constant 0 : index
    %208 = vector.load %arg13[%c0_74, %c0_75] : memref<1x32xf32, #tpu.memory_space<vmem>>, vector<1x32xf32>
    %cst_76 = arith.constant dense<0.000000e+00> : vector<16xf32>
    %209 = vector.multi_reduction <add>, %206, %cst_76 [1] : vector<16x32xf32> to vector<16xf32>
    %210 = vector.shape_cast %209 : vector<16xf32> to vector<16x1xf32>
    %cst_77 = arith.constant 3.200000e+01 : f32
    %211 = vector.broadcast %cst_77 : f32 to vector<16x1xf32>
    %212 = arith.divf %210, %211 : vector<16x1xf32>
    %213 = vector.broadcast %212 : vector<16x1xf32> to vector<16x32xf32>
    %214 = arith.subf %206, %213 : vector<16x32xf32>
    %215 = arith.mulf %214, %214 : vector<16x32xf32>
    %cst_78 = arith.constant dense<0.000000e+00> : vector<16xf32>
    %216 = vector.multi_reduction <add>, %215, %cst_78 [1] : vector<16x32xf32> to vector<16xf32>
    %217 = vector.shape_cast %216 : vector<16xf32> to vector<16x1xf32>
    %cst_79 = arith.constant 3.200000e+01 : f32
    %218 = vector.broadcast %cst_79 : f32 to vector<16x1xf32>
    %219 = arith.divf %217, %218 : vector<16x1xf32>
    %220 = vector.broadcast %212 : vector<16x1xf32> to vector<16x32xf32>
    %221 = arith.subf %206, %220 : vector<16x32xf32>
    %cst_80 = arith.constant 9.99999974E-6 : f32
    %222 = vector.broadcast %cst_80 : f32 to vector<16x1xf32>
    %223 = arith.addf %219, %222 : vector<16x1xf32>
    %224 = math.rsqrt %223 : vector<16x1xf32>
    %225 = vector.broadcast %224 : vector<16x1xf32> to vector<16x32xf32>
    %226 = arith.mulf %221, %225 : vector<16x32xf32>
    %227 = vector.broadcast %207 : vector<1x32xf32> to vector<16x32xf32>
    %228 = arith.mulf %226, %227 : vector<16x32xf32>
    %229 = vector.broadcast %208 : vector<1x32xf32> to vector<16x32xf32>
    %230 = arith.addf %228, %229 : vector<16x32xf32>
    %c0_81 = arith.constant 0 : index
    %c0_82 = arith.constant 0 : index
    %231 = vector.load %arg14[%c0_81, %c0_82] : memref<16x32xf32, #tpu.memory_space<vmem>>, vector<16x32xf32>
    tpu.vector_store %arg14[%c0_81, %c0_82], %230 {strides = array<i32>} : memref<16x32xf32, #tpu.memory_space<vmem>>, vector<16x32xf32>,
    return
  }
  func.func @transform_0(%arg0: i32) -> (i32, i32) {
    %c0_i32 = arith.constant 0 : i32
    %c0_i32_0 = arith.constant 0 : i32
    return %arg0, %c0_i32 : i32, i32
  }
  func.func @transform_1(%arg0: i32) -> (i32, i32) {
    %c0_i32 = arith.constant 0 : i32
    %c0_i32_0 = arith.constant 0 : i32
    %c0_i32_1 = arith.constant 0 : i32
    return %c0_i32, %c0_i32_0 : i32, i32
  }
  func.func @transform_2(%arg0: i32) -> (i32, i32) {
    %c0_i32 = arith.constant 0 : i32
    %c0_i32_0 = arith.constant 0 : i32
    %c0_i32_1 = arith.constant 0 : i32
    return %c0_i32, %c0_i32_0 : i32, i32
  }
  func.func @transform_3(%arg0: i32) -> (i32, i32) {
    %c0_i32 = arith.constant 0 : i32
    %c0_i32_0 = arith.constant 0 : i32
    %c0_i32_1 = arith.constant 0 : i32
    return %c0_i32, %c0_i32_0 : i32, i32
  }
  func.func @transform_4(%arg0: i32) -> (i32, i32) {
    %c0_i32 = arith.constant 0 : i32
    %c0_i32_0 = arith.constant 0 : i32
    %c0_i32_1 = arith.constant 0 : i32
    return %c0_i32, %c0_i32_0 : i32, i32
  }
  func.func @transform_5(%arg0: i32) -> (i32, i32) {
    %c0_i32 = arith.constant 0 : i32
    %c0_i32_0 = arith.constant 0 : i32
    %c0_i32_1 = arith.constant 0 : i32
    return %c0_i32, %c0_i32_0 : i32, i32
  }
  func.func @transform_6(%arg0: i32) -> (i32, i32) {
    %c0_i32 = arith.constant 0 : i32
    %c0_i32_0 = arith.constant 0 : i32
    %c0_i32_1 = arith.constant 0 : i32
    return %c0_i32, %c0_i32_0 : i32, i32
  }
  func.func @transform_7(%arg0: i32) -> (i32, i32) {
    %c0_i32 = arith.constant 0 : i32
    %c0_i32_0 = arith.constant 0 : i32
    %c0_i32_1 = arith.constant 0 : i32
    return %c0_i32, %c0_i32_0 : i32, i32
  }
  func.func @transform_8(%arg0: i32) -> (i32, i32) {
    %c0_i32 = arith.constant 0 : i32
    %c0_i32_0 = arith.constant 0 : i32
    %c0_i32_1 = arith.constant 0 : i32
    return %c0_i32, %c0_i32_0 : i32, i32
  }
  func.func @transform_9(%arg0: i32) -> (i32, i32) {
    %c0_i32 = arith.constant 0 : i32
    %c0_i32_0 = arith.constant 0 : i32
    %c0_i32_1 = arith.constant 0 : i32
    return %c0_i32, %c0_i32_0 : i32, i32
  }
  func.func @transform_10(%arg0: i32) -> (i32, i32) {
    %c0_i32 = arith.constant 0 : i32
    %c0_i32_0 = arith.constant 0 : i32
    %c0_i32_1 = arith.constant 0 : i32
    return %c0_i32, %c0_i32_0 : i32, i32
  }
  func.func @transform_11(%arg0: i32) -> (i32, i32) {
    %c0_i32 = arith.constant 0 : i32
    %c0_i32_0 = arith.constant 0 : i32
    %c0_i32_1 = arith.constant 0 : i32
    return %c0_i32, %c0_i32_0 : i32, i32
  }
  func.func @transform_12(%arg0: i32) -> (i32, i32) {
    %c0_i32 = arith.constant 0 : i32
    %c0_i32_0 = arith.constant 0 : i32
    %c0_i32_1 = arith.constant 0 : i32
    return %c0_i32, %c0_i32_0 : i32, i32
  }
  func.func @transform_13(%arg0: i32) -> (i32, i32) {
    %c0_i32 = arith.constant 0 : i32
    %c0_i32_0 = arith.constant 0 : i32
    return %arg0, %c0_i32 : i32, i32
  }
}

</mosaic_0001>

<llo_original>
// kernel: tpu_custom_call.1
$region0: #{tpu_custom_call.1}
  #allocation0 [shape = 'u32[]', space=smem, size = 0x4, offset = 0x4, fixed_abs, tag = 'smem constant byte address 0x4 - core index']
  #allocation1 [shape = 'u32[144,128]{1,0:T(1,128)}', space=vmem, size = 0x12000, scoped, tag = 'internal scratch']
  %s0 = inlined_call_operand.vmem [shape: f32[16,32], index: 0, kind: input, shape index: {}]
  %s1 = inlined_call_operand.vmem [shape: bf16[32,96], index: 1, kind: input, shape index: {}]
  %s2 = inlined_call_operand.vmem [shape: bf16[32,32], index: 2, kind: input, shape index: {}]
  %s3 = inlined_call_operand.vmem [shape: f32[1,96], index: 3, kind: input, shape index: {}]
  %s4 = inlined_call_operand.vmem [shape: f32[1,32], index: 4, kind: input, shape index: {}]
  %s5 = inlined_call_operand.vmem [shape: f32[1,32], index: 5, kind: input, shape index: {}]
  %s6 = inlined_call_operand.vmem [shape: f32[1,32], index: 6, kind: input, shape index: {}]
  %s7 = inlined_call_operand.hbm [shape: bf16[32,64], index: 7, kind: input, shape index: {}]
  %s8 = inlined_call_operand.vmem [shape: f32[1,64], index: 8, kind: input, shape index: {}]
  %s9 = inlined_call_operand.vmem [shape: bf16[64,32], index: 9, kind: input, shape index: {}]
  %s10 = inlined_call_operand.vmem [shape: f32[1,32], index: 10, kind: input, shape index: {}]
  %s11 = inlined_call_operand.vmem [shape: f32[1,32], index: 11, kind: input, shape index: {}]
  %s12 = inlined_call_operand.vmem [shape: f32[1,32], index: 12, kind: input, shape index: {}]
  %s13 = inlined_call_operand.hbm [shape: f32[16,32], index: 13, kind: output, shape index: {}]
  %s14 = sld [smem:[#allocation0]]
  $region66: #{tpu_custom_call.1} parent=0
    _
  %s16 = ssub.s32 1, %s14
  %s17 = scalar_select 0, %s16, %s14
  $region1: #{tpu_custom_call.1} parent=0
    #allocation2 [shape = 'u8[8192]{0}', space=vmem, size = 0x2000, scoped, tag = 'input window, operand 7, single buffered']
    #allocation3 [shape = 's32[1]{0}', space=sflag, size = 0x4, scoped, tag = 'scoped memory for tpu_custom_call.1']
    #allocation4 [shape = 's32[1]{0}', space=sflag, size = 0x4, scoped, tag = 'scoped memory for tpu_custom_call.1']
    #allocation5 [shape = 'u8[8192]{0}', space=vmem, size = 0x2000, scoped, tag = 'output window, operand 0, single buffered']
    %18 = vsyncpa [#allocation3], 0
    %19 = vsyncpa [#allocation4], 0
    // Predicated region
    $region2: #{tpu_custom_call.1} parent=1 // pred_check
      _
    $region3: #{tpu_custom_call.1} parent=1 // pred_check_branch
      %21 = sbr.rel (0) target = $region5
    $region4: #{tpu_custom_call.1} parent=1 // pred_region
      _
    $region5: #{tpu_custom_call.1} parent=1 // pred_fallthru
      _
    // Predicated region
    $region6: #{tpu_custom_call.1} parent=1 // pred_check
      _
    $region7: #{tpu_custom_call.1} parent=1 // pred_check_branch
      %23 = sbr.rel (0) target = $region9
    $region8: #{tpu_custom_call.1} parent=1 // pred_region
      _
    $region9: #{tpu_custom_call.1} parent=1 // pred_fallthru
      _
    // Predicated region
    $region10: #{tpu_custom_call.1} parent=1 // pred_check
      _
    $region11: #{tpu_custom_call.1} parent=1 // pred_check_branch
      %25 = sbr.rel (0) target = $region13
    $region12: #{tpu_custom_call.1} parent=1 // pred_region
      _
    $region13: #{tpu_custom_call.1} parent=1 // pred_fallthru
      _
    // Predicated region
    $region14: #{tpu_custom_call.1} parent=1 // pred_check
      _
    $region15: #{tpu_custom_call.1} parent=1 // pred_check_branch
      %27 = sbr.rel (0) target = $region17
    $region16: #{tpu_custom_call.1} parent=1 // pred_region
      _
    $region17: #{tpu_custom_call.1} parent=1 // pred_fallthru
      _
    // Predicated region
    $region18: #{tpu_custom_call.1} parent=1 // pred_check
      _
    $region19: #{tpu_custom_call.1} parent=1 // pred_check_branch
      %29 = sbr.rel (0) target = $region21
    $region20: #{tpu_custom_call.1} parent=1 // pred_region
      _
    $region21: #{tpu_custom_call.1} parent=1 // pred_fallthru
      _
    // Predicated region
    $region22: #{tpu_custom_call.1} parent=1 // pred_check
      _
    $region23: #{tpu_custom_call.1} parent=1 // pred_check_branch
      %31 = sbr.rel (0) target = $region25
    $region24: #{tpu_custom_call.1} parent=1 // pred_region
      _
    $region25: #{tpu_custom_call.1} parent=1 // pred_fallthru
      _
    // Predicated region
    $region26: #{tpu_custom_call.1} parent=1 // pred_check
      _
    $region27: #{tpu_custom_call.1} parent=1 // pred_check_branch
      %33 = sbr.rel (0) target = $region29
    $region28: #{tpu_custom_call.1} parent=1 // pred_region
      _
    $region29: #{tpu_custom_call.1} parent=1 // pred_fallthru
      _
    // Predicated region
    $region30: #{tpu_custom_call.1} parent=1 // pred_check
      _
    $region31: #{tpu_custom_call.1} parent=1 // pred_check_branch
      %35 = sbr.rel (0) target = $region33
    $region32: #{tpu_custom_call.1} parent=1 // pred_region
      %s37 = ssub.s32 256, 256
      %38 = vsyncadd [#allocation3], %s37
      %s39 = sshll.u32 [#allocation2], 4
      %s40 = int_to_ptr.vmem [resolvable:$true] %s39
      %45 = dma.hbm_to_vmem [thread:$0]  %s7, 256, %s40, [#allocation3], 64, 64, 4
    $region33: #{tpu_custom_call.1} parent=1 // pred_fallthru
      _
    // Predicated region
    $region34: #{tpu_custom_call.1} parent=1 // pred_check
      _
    $region35: #{tpu_custom_call.1} parent=1 // pred_check_branch
      %47 = sbr.rel (0) target = $region37
    $region36: #{tpu_custom_call.1} parent=1 // pred_region
      _
    $region37: #{tpu_custom_call.1} parent=1 // pred_fallthru
      _
    // Predicated region
    $region38: #{tpu_custom_call.1} parent=1 // pred_check
      _
    $region39: #{tpu_custom_call.1} parent=1 // pred_check_branch
      %49 = sbr.rel (0) target = $region41
    $region40: #{tpu_custom_call.1} parent=1 // pred_region
      _
    $region41: #{tpu_custom_call.1} parent=1 // pred_fallthru
      _
    // Predicated region
    $region42: #{tpu_custom_call.1} parent=1 // pred_check
      _
    $region43: #{tpu_custom_call.1} parent=1 // pred_check_branch
      %51 = sbr.rel (0) target = $region45
    $region44: #{tpu_custom_call.1} parent=1 // pred_region
      _
    $region45: #{tpu_custom_call.1} parent=1 // pred_fallthru
      _
    // Predicated region
    $region46: #{tpu_custom_call.1} parent=1 // pred_check
      _
    $region47: #{tpu_custom_call.1} parent=1 // pred_check_branch
      %53 = sbr.rel (0) target = $region49
    $region48: #{tpu_custom_call.1} parent=1 // pred_region
      _
    $region49: #{tpu_custom_call.1} parent=1 // pred_fallthru
      _
    // Predicated region
    $region50: #{tpu_custom_call.1} parent=1 // pred_check
      _
    $region51: #{tpu_custom_call.1} parent=1 // pred_check_branch
      %55 = sbr.rel (0) target = $region53
    $region52: #{tpu_custom_call.1} parent=1 // pred_region
      _
    $region53: #{tpu_custom_call.1} parent=1 // pred_fallthru
      _
    // Predicated region
    $region54: #{tpu_custom_call.1} parent=1 // pred_check
      _
    $region55: #{tpu_custom_call.1} parent=1 // pred_check_branch
      %57 = sbr.rel (0) target = $region57
    $region56: #{tpu_custom_call.1} parent=1 // pred_region
      %58 = dma.done [#allocation3], 256
    $region57: #{tpu_custom_call.1} parent=1 // pred_fallthru
      _
    %v60 = vld [vmem:[%s0] sm:$0xff]
    %v61 = vld [vmem:[%s0 + $0x8] sm:$0xff]
    %v62 = vpack.c.bf16 %v61, %v60
    %v63 = vld [vmem:[%s1] sm:$0xf]
    %v64 = vld [vmem:[%s1 + $0x4] sm:$0xf]
    %v65 = vld [vmem:[%s1 + $0x8] sm:$0xf]
    %v66 = vld [vmem:[%s1 + $0xc] sm:$0xf]
    %v67 = vld [vmem:[%s3] sm:$0x1]
    %v69 = vlaneseq
    %v70 = vshrl.u32 %v69, 7
    %v71 = vsub.s32 0, %v70
    %v72 = vrot.slane %v67, %v71
    %v78 = vunpack.c.l.b16 %v63
    %v79 = vunpack.c.l.b16 %v64
    %v80 = vunpack.c.l.b16 %v65
    %v81 = vunpack.c.l.b16 %v66
    %v82 = vpack.c.b16 %v79, %v78
    %v83 = vpack.c.b16 %v81, %v80
    %vm86 = vcmask 261120
    %v88 = vsel %vm86, %v62, 0
    %90 = vmatprep.subr.bf16.mxu0 0
    %91 = vmatpush1.bf16.msra.mxu0 %v82
    %92 = vmatprep.subr.bf16.mxu0 0
    %93 = vmatpush1.bf16.msra.mxu0 %v83
    %94 = vmatprep.subr.bf16.mxu0 0
    %95 = vmatpush1.bf16.msra.mxu0 0
    %96 = vmatprep.subr.bf16.mxu0 0
    %97 = vmatpush1.bf16.msra.mxu0 0
    %98 = vmatprep.subr.bf16.mxu0 0
    %99 = vmatpush1.bf16.msra.mxu0 0
    %100 = vmatprep.subr.bf16.mxu0 0
    %101 = vmatpush1.bf16.msra.mxu0 0
    %102 = vmatprep.subr.bf16.mxu0 0
    %103 = vmatpush1.bf16.msra.mxu0 0
    %104 = vmatprep.subr.bf16.mxu0 0
    %105 = vmatpush1.bf16.msra.mxu0 0
    %106 = vmatprep.subr.bf16.mxu0 0
    %107 = vmatpush1.bf16.msra.mxu0 0
    %108 = vmatprep.subr.bf16.mxu0 0
    %109 = vmatpush1.bf16.msra.mxu0 0
    %110 = vmatprep.subr.bf16.mxu0 0
    %111 = vmatpush1.bf16.msra.mxu0 0
    %112 = vmatprep.subr.bf16.mxu0 0
    %113 = vmatpush1.bf16.msra.mxu0 0
    %114 = vmatprep.subr.bf16.mxu0 0
    %115 = vmatpush1.bf16.msra.mxu0 0
    %116 = vmatprep.subr.bf16.mxu0 0
    %117 = vmatpush1.bf16.msra.mxu0 0
    %118 = vmatprep.subr.bf16.mxu0 0
    %119 = vmatpush1.bf16.msra.mxu0 0
    %120 = vmatprep.subr.bf16.mxu0 0
    %121 = vmatpush1.bf16.msra.mxu0 0
    %122 = vmatprep.mubr.bf16.mxu0 0
    %123 = vmatmul.mubr.bf16.gmra.mrb[0].mxu0 %v88
    %v124 = vpop.f32.mrb[0].mxu0
    %v125 = vadd.f32 %v72, %v124
    %v126 = vpop.f32.mrb[0].mxu0
    %v127 = vpop.f32.mrb[0].mxu0
    %v128 = vadd.f32 %v72, %v127
    %v129 = vpop.f32.mrb[0].mxu0
    %130 = vdwg.mxu0
    %v131 = vpack.c.bf16 %v128, %v125
    %133 = vrot.lane.b32.xlu0 %v131, 96
    %v134 = vpop.permute.xlu0 %133
    %vm135 = vcmask 64512
    %v137 = vsel %vm135, %v131, 0
    %v140 = vsel %vm135, %v134, 0
    %142 = vmatprep.subr.bf16.mxu0 0
    %143 = vmatpush1.bf16.xpose.msra.mxu0 %v140
    %144 = vmatprep.subr.bf16.mxu0 0
    %145 = vmatpush1.bf16.xpose.msra.mxu0 0
    %146 = vmatprep.subr.bf16.mxu0 0
    %147 = vmatpush1.bf16.xpose.msra.mxu0 0
    %148 = vmatprep.subr.bf16.mxu0 0
    %149 = vmatpush1.bf16.xpose.msra.mxu0 0
    %150 = vmatprep.subr.bf16.mxu0 0
    %151 = vmatpush1.bf16.xpose.msra.mxu0 0
    %152 = vmatprep.subr.bf16.mxu0 0
    %153 = vmatpush1.bf16.xpose.msra.mxu0 0
    %154 = vmatprep.subr.bf16.mxu0 0
    %155 = vmatpush1.bf16.xpose.msra.mxu0 0
    %156 = vmatprep.subr.bf16.mxu0 0
    %157 = vmatpush1.bf16.xpose.msra.mxu0 0
    %158 = vmatprep.subr.bf16.mxu0 0
    %159 = vmatpush1.bf16.xpose.msra.mxu0 0
    %160 = vmatprep.subr.bf16.mxu0 0
    %161 = vmatpush1.bf16.xpose.msra.mxu0 0
    %162 = vmatprep.subr.bf16.mxu0 0
    %163 = vmatpush1.bf16.xpose.msra.mxu0 0
    %164 = vmatprep.subr.bf16.mxu0 0
    %165 = vmatpush1.bf16.xpose.msra.mxu0 0
    %166 = vmatprep.subr.bf16.mxu0 0
    %167 = vmatpush1.bf16.xpose.msra.mxu0 0
    %168 = vmatprep.subr.bf16.mxu0 0
    %169 = vmatpush1.bf16.xpose.msra.mxu0 0
    %170 = vmatprep.subr.bf16.mxu0 0
    %171 = vmatpush1.bf16.xpose.msra.mxu0 0
    %172 = vmatprep.subr.bf16.mxu0 0
    %173 = vmatpush1.bf16.xpose.msra.mxu0 0
    %174 = vmatprep.mubr.bf16.mxu0 0
    %175 = vmatmul.mubr.bf16.gmra.mrb[0].mxu0 %v137
    %v176 = vpop.f32.mrb[0].mxu0
    %v177 = vadd.f32 0.0, %v176
    %v178 = vpop.f32.mrb[0].mxu0
    %v179 = vpop.f32.mrb[0].mxu0
    %v180 = vpop.f32.mrb[0].mxu0
    %181 = vdwg.mxu0
    %v182 = vmul.f32 %v177, 0.35355338
    %v183 = vsel %vm135, %v182, -inf
    %184 = vmax.xlane.f32.xlu0 %v183
    %v185 = vpop.xlane.xlu0 %184
    %v186 = vsub.f32 %v182, %v185
    %v187 = vmul.f32 %v186, 1.442695
    %v188 = vpow.pop %v187
    %v189 = vsel %vm135, %v188, 0.0
    %190 = vadd.xlane.f32.xlu0 %v189
    %v191 = vpop.xlane.xlu0 %190
    %v192 = vrcp.pop %v191
    %v193 = vmul.f32 %v188, %v192
    %v194 = vpack.c.bf16 %v193, %v193
    %195 = vrot.lane.b32.xlu0 %v131, 64
    %v196 = vpop.permute.xlu0 %195
    %v198 = vsel %vm135, %v194, 0
    %vm200 = vcmask 1043456
    %v202 = vsel %vm200, %v196, 0
    %204 = vmatprep.subr.bf16.mxu0 0
    %205 = vmatpush1.bf16.msra.mxu0 %v202
    %206 = vmatprep.subr.bf16.mxu0 0
    %207 = vmatpush1.bf16.msra.mxu0 0
    %208 = vmatprep.subr.bf16.mxu0 0
    %209 = vmatpush1.bf16.msra.mxu0 0
    %210 = vmatprep.subr.bf16.mxu0 0
    %211 = vmatpush1.bf16.msra.mxu0 0
    %212 = vmatprep.subr.bf16.mxu0 0
    %213 = vmatpush1.bf16.msra.mxu0 0
    %214 = vmatprep.subr.bf16.mxu0 0
    %215 = vmatpush1.bf16.msra.mxu0 0
    %216 = vmatprep.subr.bf16.mxu0 0
    %217 = vmatpush1.bf16.msra.mxu0 0
    %218 = vmatprep.subr.bf16.mxu0 0
    %219 = vmatpush1.bf16.msra.mxu0 0
    %220 = vmatprep.subr.bf16.mxu0 0
    %221 = vmatpush1.bf16.msra.mxu0 0
    %222 = vmatprep.subr.bf16.mxu0 0
    %223 = vmatpush1.bf16.msra.mxu0 0
    %224 = vmatprep.subr.bf16.mxu0 0
    %225 = vmatpush1.bf16.msra.mxu0 0
    %226 = vmatprep.subr.bf16.mxu0 0
    %227 = vmatpush1.bf16.msra.mxu0 0
    %228 = vmatprep.subr.bf16.mxu0 0
    %229 = vmatpush1.bf16.msra.mxu0 0
    %230 = vmatprep.subr.bf16.mxu0 0
    %231 = vmatpush1.bf16.msra.mxu0 0
    %232 = vmatprep.subr.bf16.mxu0 0
    %233 = vmatpush1.bf16.msra.mxu0 0
    %234 = vmatprep.subr.bf16.mxu0 0
    %235 = vmatpush1.bf16.msra.mxu0 0
    %236 = vmatprep.mubr.bf16.mxu0 0
    %237 = vmatmul.mubr.bf16.gmra.mrb[0].mxu0 %v198
    %v238 = vpop.f32.mrb[0].mxu0
    %v239 = vadd.f32 0.0, %v238
    %v240 = vpop.f32.mrb[0].mxu0
    %v241 = vpop.f32.mrb[0].mxu0
    %v242 = vpop.f32.mrb[0].mxu0
    %243 = vdwg.mxu0
    %244 = vrot.lane.b32.xlu0 %v131, 120
    %v245 = vpop.permute.xlu0 %244
    %246 = vrot.lane.b32.xlu0 %v131, 88
    %v247 = vpop.permute.xlu0 %246
    %v249 = vsel %vm135, %v245, 0
    %v252 = vsel %vm135, %v247, 0
    %254 = vmatprep.subr.bf16.mxu0 0
    %255 = vmatpush1.bf16.xpose.msra.mxu0 %v252
    %256 = vmatprep.subr.bf16.mxu0 0
    %257 = vmatpush1.bf16.xpose.msra.mxu0 0
    %258 = vmatprep.subr.bf16.mxu0 0
    %259 = vmatpush1.bf16.xpose.msra.mxu0 0
    %260 = vmatprep.subr.bf16.mxu0 0
    %261 = vmatpush1.bf16.xpose.msra.mxu0 0
    %262 = vmatprep.subr.bf16.mxu0 0
    %263 = vmatpush1.bf16.xpose.msra.mxu0 0
    %264 = vmatprep.subr.bf16.mxu0 0
    %265 = vmatpush1.bf16.xpose.msra.mxu0 0
    %266 = vmatprep.subr.bf16.mxu0 0
    %267 = vmatpush1.bf16.xpose.msra.mxu0 0
    %268 = vmatprep.subr.bf16.mxu0 0
    %269 = vmatpush1.bf16.xpose.msra.mxu0 0
    %270 = vmatprep.subr.bf16.mxu0 0
    %271 = vmatpush1.bf16.xpose.msra.mxu0 0
    %272 = vmatprep.subr.bf16.mxu0 0
    %273 = vmatpush1.bf16.xpose.msra.mxu0 0
    %274 = vmatprep.subr.bf16.mxu0 0
    %275 = vmatpush1.bf16.xpose.msra.mxu0 0
    %276 = vmatprep.subr.bf16.mxu0 0
    %277 = vmatpush1.bf16.xpose.msra.mxu0 0
    %278 = vmatprep.subr.bf16.mxu0 0
    %279 = vmatpush1.bf16.xpose.msra.mxu0 0
    %280 = vmatprep.subr.bf16.mxu0 0
    %281 = vmatpush1.bf16.xpose.msra.mxu0 0
    %282 = vmatprep.subr.bf16.mxu0 0
    %283 = vmatpush1.bf16.xpose.msra.mxu0 0
    %284 = vmatprep.subr.bf16.mxu0 0
    %285 = vmatpush1.bf16.xpose.msra.mxu0 0
    %286 = vmatprep.mubr.bf16.mxu0 0
    %287 = vmatmul.mubr.bf16.gmra.mrb[0].mxu0 %v249
    %v288 = vpop.f32.mrb[0].mxu0
    %v289 = vadd.f32 0.0, %v288
    %v290 = vpop.f32.mrb[0].mxu0
    %v291 = vpop.f32.mrb[0].mxu0
    %v292 = vpop.f32.mrb[0].mxu0
    %293 = vdwg.mxu0
    %v294 = vmul.f32 %v289, 0.35355338
    %v295 = vsel %vm135, %v294, -inf
    %296 = vmax.xlane.f32.xlu0 %v295
    %v297 = vpop.xlane.xlu0 %296
    %v298 = vsub.f32 %v294, %v297
    %v299 = vmul.f32 %v298, 1.442695
    %v300 = vpow.pop %v299
    %v301 = vsel %vm135, %v300, 0.0
    %302 = vadd.xlane.f32.xlu0 %v301
    %v303 = vpop.xlane.xlu0 %302
    %v304 = vrcp.pop %v303
    %v305 = vmul.f32 %v300, %v304
    %v306 = vpack.c.bf16 %v305, %v305
    %307 = vrot.lane.b32.xlu0 %v131, 56
    %v308 = vpop.permute.xlu0 %307
    %v310 = vsel %vm135, %v306, 0
    %v313 = vsel %vm200, %v308, 0
    %315 = vmatprep.subr.bf16.mxu0 0
    %316 = vmatpush1.bf16.msra.mxu0 %v313
    %317 = vmatprep.subr.bf16.mxu0 0
    %318 = vmatpush1.bf16.msra.mxu0 0
    %319 = vmatprep.subr.bf16.mxu0 0
    %320 = vmatpush1.bf16.msra.mxu0 0
    %321 = vmatprep.subr.bf16.mxu0 0
    %322 = vmatpush1.bf16.msra.mxu0 0
    %323 = vmatprep.subr.bf16.mxu0 0
    %324 = vmatpush1.bf16.msra.mxu0 0
    %325 = vmatprep.subr.bf16.mxu0 0
    %326 = vmatpush1.bf16.msra.mxu0 0
    %327 = vmatprep.subr.bf16.mxu0 0
    %328 = vmatpush1.bf16.msra.mxu0 0
    %329 = vmatprep.subr.bf16.mxu0 0
    %330 = vmatpush1.bf16.msra.mxu0 0
    %331 = vmatprep.subr.bf16.mxu0 0
    %332 = vmatpush1.bf16.msra.mxu0 0
    %333 = vmatprep.subr.bf16.mxu0 0
    %334 = vmatpush1.bf16.msra.mxu0 0
    %335 = vmatprep.subr.bf16.mxu0 0
    %336 = vmatpush1.bf16.msra.mxu0 0
    %337 = vmatprep.subr.bf16.mxu0 0
    %338 = vmatpush1.bf16.msra.mxu0 0
    %339 = vmatprep.subr.bf16.mxu0 0
    %340 = vmatpush1.bf16.msra.mxu0 0
    %341 = vmatprep.subr.bf16.mxu0 0
    %342 = vmatpush1.bf16.msra.mxu0 0
    %343 = vmatprep.subr.bf16.mxu0 0
    %344 = vmatpush1.bf16.msra.mxu0 0
    %345 = vmatprep.subr.bf16.mxu0 0
    %346 = vmatpush1.bf16.msra.mxu0 0
    %347 = vmatprep.mubr.bf16.mxu0 0
    %348 = vmatmul.mubr.bf16.gmra.mrb[0].mxu0 %v310
    %v349 = vpop.f32.mrb[0].mxu0
    %v350 = vadd.f32 0.0, %v349
    %v351 = vpop.f32.mrb[0].mxu0
    %v352 = vpop.f32.mrb[0].mxu0
    %v353 = vpop.f32.mrb[0].mxu0
    %354 = vdwg.mxu0
    %355 = vrot.lane.b32.xlu0 %v131, 112
    %v356 = vpop.permute.xlu0 %355
    %357 = vrot.lane.b32.xlu0 %v131, 80
    %v358 = vpop.permute.xlu0 %357
    %v360 = vsel %vm135, %v356, 0
    %v363 = vsel %vm135, %v358, 0
    %365 = vmatprep.subr.bf16.mxu0 0
    %366 = vmatpush1.bf16.xpose.msra.mxu0 %v363
    %367 = vmatprep.subr.bf16.mxu0 0
    %368 = vmatpush1.bf16.xpose.msra.mxu0 0
    %369 = vmatprep.subr.bf16.mxu0 0
    %370 = vmatpush1.bf16.xpose.msra.mxu0 0
    %371 = vmatprep.subr.bf16.mxu0 0
    %372 = vmatpush1.bf16.xpose.msra.mxu0 0
    %373 = vmatprep.subr.bf16.mxu0 0
    %374 = vmatpush1.bf16.xpose.msra.mxu0 0
    %375 = vmatprep.subr.bf16.mxu0 0
    %376 = vmatpush1.bf16.xpose.msra.mxu0 0
    %377 = vmatprep.subr.bf16.mxu0 0
    %378 = vmatpush1.bf16.xpose.msra.mxu0 0
    %379 = vmatprep.subr.bf16.mxu0 0
    %380 = vmatpush1.bf16.xpose.msra.mxu0 0
    %381 = vmatprep.subr.bf16.mxu0 0
    %382 = vmatpush1.bf16.xpose.msra.mxu0 0
    %383 = vmatprep.subr.bf16.mxu0 0
    %384 = vmatpush1.bf16.xpose.msra.mxu0 0
    %385 = vmatprep.subr.bf16.mxu0 0
    %386 = vmatpush1.bf16.xpose.msra.mxu0 0
    %387 = vmatprep.subr.bf16.mxu0 0
    %388 = vmatpush1.bf16.xpose.msra.mxu0 0
    %389 = vmatprep.subr.bf16.mxu0 0
    %390 = vmatpush1.bf16.xpose.msra.mxu0 0
    %391 = vmatprep.subr.bf16.mxu0 0
    %392 = vmatpush1.bf16.xpose.msra.mxu0 0
    %393 = vmatprep.subr.bf16.mxu0 0
    %394 = vmatpush1.bf16.xpose.msra.mxu0 0
    %395 = vmatprep.subr.bf16.mxu0 0
    %396 = vmatpush1.bf16.xpose.msra.mxu0 0
    %397 = vmatprep.mubr.bf16.mxu0 0
    %398 = vmatmul.mubr.bf16.gmra.mrb[0].mxu0 %v360
    %v399 = vpop.f32.mrb[0].mxu0
    %v400 = vadd.f32 0.0, %v399
    %v401 = vpop.f32.mrb[0].mxu0
    %v402 = vpop.f32.mrb[0].mxu0
    %v403 = vpop.f32.mrb[0].mxu0
    %404 = vdwg.mxu0
    %v405 = vmul.f32 %v400, 0.35355338
    %v406 = vsel %vm135, %v405, -inf
    %407 = vmax.xlane.f32.xlu0 %v406
    %v408 = vpop.xlane.xlu0 %407
    %v409 = vsub.f32 %v405, %v408
    %v410 = vmul.f32 %v409, 1.442695
    %v411 = vpow.pop %v410
    %v412 = vsel %vm135, %v411, 0.0
    %413 = vadd.xlane.f32.xlu0 %v412
    %v414 = vpop.xlane.xlu0 %413
    %v415 = vrcp.pop %v414
    %v416 = vmul.f32 %v411, %v415
    %v417 = vpack.c.bf16 %v416, %v416
    %418 = vrot.lane.b32.xlu0 %v131, 48
    %v419 = vpop.permute.xlu0 %418
    %v421 = vsel %vm135, %v417, 0
    %v424 = vsel %vm200, %v419, 0
    %426 = vmatprep.subr.bf16.mxu0 0
    %427 = vmatpush1.bf16.msra.mxu0 %v424
    %428 = vmatprep.subr.bf16.mxu0 0
    %429 = vmatpush1.bf16.msra.mxu0 0
    %430 = vmatprep.subr.bf16.mxu0 0
    %431 = vmatpush1.bf16.msra.mxu0 0
    %432 = vmatprep.subr.bf16.mxu0 0
    %433 = vmatpush1.bf16.msra.mxu0 0
    %434 = vmatprep.subr.bf16.mxu0 0
    %435 = vmatpush1.bf16.msra.mxu0 0
    %436 = vmatprep.subr.bf16.mxu0 0
    %437 = vmatpush1.bf16.msra.mxu0 0
    %438 = vmatprep.subr.bf16.mxu0 0
    %439 = vmatpush1.bf16.msra.mxu0 0
    %440 = vmatprep.subr.bf16.mxu0 0
    %441 = vmatpush1.bf16.msra.mxu0 0
    %442 = vmatprep.subr.bf16.mxu0 0
    %443 = vmatpush1.bf16.msra.mxu0 0
    %444 = vmatprep.subr.bf16.mxu0 0
    %445 = vmatpush1.bf16.msra.mxu0 0
    %446 = vmatprep.subr.bf16.mxu0 0
    %447 = vmatpush1.bf16.msra.mxu0 0
    %448 = vmatprep.subr.bf16.mxu0 0
    %449 = vmatpush1.bf16.msra.mxu0 0
    %450 = vmatprep.subr.bf16.mxu0 0
    %451 = vmatpush1.bf16.msra.mxu0 0
    %452 = vmatprep.subr.bf16.mxu0 0
    %453 = vmatpush1.bf16.msra.mxu0 0
    %454 = vmatprep.subr.bf16.mxu0 0
    %455 = vmatpush1.bf16.msra.mxu0 0
    %456 = vmatprep.subr.bf16.mxu0 0
    %457 = vmatpush1.bf16.msra.mxu0 0
    %458 = vmatprep.mubr.bf16.mxu0 0
    %459 = vmatmul.mubr.bf16.gmra.mrb[0].mxu0 %v421
    %v460 = vpop.f32.mrb[0].mxu0
    %v461 = vadd.f32 0.0, %v460
    %v462 = vpop.f32.mrb[0].mxu0
    %v463 = vpop.f32.mrb[0].mxu0
    %v464 = vpop.f32.mrb[0].mxu0
    %465 = vdwg.mxu0
    %466 = vrot.lane.b32.xlu0 %v131, 104
    %v467 = vpop.permute.xlu0 %466
    %468 = vrot.lane.b32.xlu0 %v131, 72
    %v469 = vpop.permute.xlu0 %468
    %v471 = vsel %vm135, %v467, 0
    %v474 = vsel %vm135, %v469, 0
    %476 = vmatprep.subr.bf16.mxu0 0
    %477 = vmatpush1.bf16.xpose.msra.mxu0 %v474
    %478 = vmatprep.subr.bf16.mxu0 0
    %479 = vmatpush1.bf16.xpose.msra.mxu0 0
    %480 = vmatprep.subr.bf16.mxu0 0
    %481 = vmatpush1.bf16.xpose.msra.mxu0 0
    %482 = vmatprep.subr.bf16.mxu0 0
    %483 = vmatpush1.bf16.xpose.msra.mxu0 0
    %484 = vmatprep.subr.bf16.mxu0 0
    %485 = vmatpush1.bf16.xpose.msra.mxu0 0
    %486 = vmatprep.subr.bf16.mxu0 0
    %487 = vmatpush1.bf16.xpose.msra.mxu0 0
    %488 = vmatprep.subr.bf16.mxu0 0
    %489 = vmatpush1.bf16.xpose.msra.mxu0 0
    %490 = vmatprep.subr.bf16.mxu0 0
    %491 = vmatpush1.bf16.xpose.msra.mxu0 0
    %492 = vmatprep.subr.bf16.mxu0 0
    %493 = vmatpush1.bf16.xpose.msra.mxu0 0
    %494 = vmatprep.subr.bf16.mxu0 0
    %495 = vmatpush1.bf16.xpose.msra.mxu0 0
    %496 = vmatprep.subr.bf16.mxu0 0
    %497 = vmatpush1.bf16.xpose.msra.mxu0 0
    %498 = vmatprep.subr.bf16.mxu0 0
    %499 = vmatpush1.bf16.xpose.msra.mxu0 0
    %500 = vmatprep.subr.bf16.mxu0 0
    %501 = vmatpush1.bf16.xpose.msra.mxu0 0
    %502 = vmatprep.subr.bf16.mxu0 0
    %503 = vmatpush1.bf16.xpose.msra.mxu0 0
    %504 = vmatprep.subr.bf16.mxu0 0
    %505 = vmatpush1.bf16.xpose.msra.mxu0 0
    %506 = vmatprep.subr.bf16.mxu0 0
    %507 = vmatpush1.bf16.xpose.msra.mxu0 0
    %508 = vmatprep.mubr.bf16.mxu0 0
    %509 = vmatmul.mubr.bf16.gmra.mrb[0].mxu0 %v471
    %v510 = vpop.f32.mrb[0].mxu0
    %v511 = vadd.f32 0.0, %v510
    %v512 = vpop.f32.mrb[0].mxu0
    %v513 = vpop.f32.mrb[0].mxu0
    %v514 = vpop.f32.mrb[0].mxu0
    %515 = vdwg.mxu0
    %v516 = vmul.f32 %v511, 0.35355338
    %v517 = vsel %vm135, %v516, -inf
    %518 = vmax.xlane.f32.xlu0 %v517
    %v519 = vpop.xlane.xlu0 %518
    %v520 = vsub.f32 %v516, %v519
    %v521 = vmul.f32 %v520, 1.442695
    %v522 = vpow.pop %v521
    %v523 = vsel %vm135, %v522, 0.0
    %524 = vadd.xlane.f32.xlu0 %v523
    %v525 = vpop.xlane.xlu0 %524
    %v526 = vrcp.pop %v525
    %v527 = vmul.f32 %v522, %v526
    %v528 = vpack.c.bf16 %v527, %v527
    %529 = vrot.lane.b32.xlu0 %v131, 40
    %v530 = vpop.permute.xlu0 %529
    %v532 = vsel %vm135, %v528, 0
    %v535 = vsel %vm200, %v530, 0
    %537 = vmatprep.subr.bf16.mxu0 0
    %538 = vmatpush1.bf16.msra.mxu0 %v535
    %539 = vmatprep.subr.bf16.mxu0 0
    %540 = vmatpush1.bf16.msra.mxu0 0
    %541 = vmatprep.subr.bf16.mxu0 0
    %542 = vmatpush1.bf16.msra.mxu0 0
    %543 = vmatprep.subr.bf16.mxu0 0
    %544 = vmatpush1.bf16.msra.mxu0 0
    %545 = vmatprep.subr.bf16.mxu0 0
    %546 = vmatpush1.bf16.msra.mxu0 0
    %547 = vmatprep.subr.bf16.mxu0 0
    %548 = vmatpush1.bf16.msra.mxu0 0
    %549 = vmatprep.subr.bf16.mxu0 0
    %550 = vmatpush1.bf16.msra.mxu0 0
    %551 = vmatprep.subr.bf16.mxu0 0
    %552 = vmatpush1.bf16.msra.mxu0 0
    %553 = vmatprep.subr.bf16.mxu0 0
    %554 = vmatpush1.bf16.msra.mxu0 0
    %555 = vmatprep.subr.bf16.mxu0 0
    %556 = vmatpush1.bf16.msra.mxu0 0
    %557 = vmatprep.subr.bf16.mxu0 0
    %558 = vmatpush1.bf16.msra.mxu0 0
    %559 = vmatprep.subr.bf16.mxu0 0
    %560 = vmatpush1.bf16.msra.mxu0 0
    %561 = vmatprep.subr.bf16.mxu0 0
    %562 = vmatpush1.bf16.msra.mxu0 0
    %563 = vmatprep.subr.bf16.mxu0 0
    %564 = vmatpush1.bf16.msra.mxu0 0
    %565 = vmatprep.subr.bf16.mxu0 0
    %566 = vmatpush1.bf16.msra.mxu0 0
    %567 = vmatprep.subr.bf16.mxu0 0
    %568 = vmatpush1.bf16.msra.mxu0 0
    %569 = vmatprep.mubr.bf16.mxu0 0
    %570 = vmatmul.mubr.bf16.gmra.mrb[0].mxu0 %v532
    %v571 = vpop.f32.mrb[0].mxu0
    %v572 = vadd.f32 0.0, %v571
    %v573 = vpop.f32.mrb[0].mxu0
    %v574 = vpop.f32.mrb[0].mxu0
    %v575 = vpop.f32.mrb[0].mxu0
    %576 = vdwg.mxu0
    %578 = vrot.lane.b32.xlu0 %v350, 8
    %v579 = vpop.permute.xlu0 %578
    %582 = vrot.lane.b32.xlu0 %v461, 16
    %v583 = vpop.permute.xlu0 %582
    %586 = vrot.lane.b32.xlu0 %v572, 24
    %v587 = vpop.permute.xlu0 %586
    %v589 = vsel %vm135, %v239, %v579
    %vm590 = vcmask 130048
    %v591 = vsel %vm590, %v589, %v583
    %vm592 = vcmask 195584
    %v593 = vsel %vm592, %v591, %v587
    %v594 = vrot.slane %v131, 4
    %595 = vrot.lane.b32.xlu0 %v594, 96
    %v596 = vpop.permute.xlu0 %595
    %v598 = vsel %vm135, %v594, 0
    %v601 = vsel %vm135, %v596, 0
    %603 = vmatprep.subr.bf16.mxu0 0
    %604 = vmatpush1.bf16.xpose.msra.mxu0 %v601
    %605 = vmatprep.subr.bf16.mxu0 0
    %606 = vmatpush1.bf16.xpose.msra.mxu0 0
    %607 = vmatprep.subr.bf16.mxu0 0
    %608 = vmatpush1.bf16.xpose.msra.mxu0 0
    %609 = vmatprep.subr.bf16.mxu0 0
    %610 = vmatpush1.bf16.xpose.msra.mxu0 0
    %611 = vmatprep.subr.bf16.mxu0 0
    %612 = vmatpush1.bf16.xpose.msra.mxu0 0
    %613 = vmatprep.subr.bf16.mxu0 0
    %614 = vmatpush1.bf16.xpose.msra.mxu0 0
    %615 = vmatprep.subr.bf16.mxu0 0
    %616 = vmatpush1.bf16.xpose.msra.mxu0 0
    %617 = vmatprep.subr.bf16.mxu0 0
    %618 = vmatpush1.bf16.xpose.msra.mxu0 0
    %619 = vmatprep.subr.bf16.mxu0 0
    %620 = vmatpush1.bf16.xpose.msra.mxu0 0
    %621 = vmatprep.subr.bf16.mxu0 0
    %622 = vmatpush1.bf16.xpose.msra.mxu0 0
    %623 = vmatprep.subr.bf16.mxu0 0
    %624 = vmatpush1.bf16.xpose.msra.mxu0 0
    %625 = vmatprep.subr.bf16.mxu0 0
    %626 = vmatpush1.bf16.xpose.msra.mxu0 0
    %627 = vmatprep.subr.bf16.mxu0 0
    %628 = vmatpush1.bf16.xpose.msra.mxu0 0
    %629 = vmatprep.subr.bf16.mxu0 0
    %630 = vmatpush1.bf16.xpose.msra.mxu0 0
    %631 = vmatprep.subr.bf16.mxu0 0
    %632 = vmatpush1.bf16.xpose.msra.mxu0 0
    %633 = vmatprep.subr.bf16.mxu0 0
    %634 = vmatpush1.bf16.xpose.msra.mxu0 0
    %635 = vmatprep.mubr.bf16.mxu0 0
    %636 = vmatmul.mubr.bf16.gmra.mrb[0].mxu0 %v598
    %v637 = vpop.f32.mrb[0].mxu0
    %v638 = vadd.f32 0.0, %v637
    %v639 = vpop.f32.mrb[0].mxu0
    %v640 = vpop.f32.mrb[0].mxu0
    %v641 = vpop.f32.mrb[0].mxu0
    %642 = vdwg.mxu0
    %v643 = vmul.f32 %v638, 0.35355338
    %v644 = vsel %vm135, %v643, -inf
    %645 = vmax.xlane.f32.xlu0 %v644
    %v646 = vpop.xlane.xlu0 %645
    %v647 = vsub.f32 %v643, %v646
    %v648 = vmul.f32 %v647, 1.442695
    %v649 = vpow.pop %v648
    %v650 = vsel %vm135, %v649, 0.0
    %651 = vadd.xlane.f32.xlu0 %v650
    %v652 = vpop.xlane.xlu0 %651
    %v653 = vrcp.pop %v652
    %v654 = vmul.f32 %v649, %v653
    %v655 = vpack.c.bf16 %v654, %v654
    %656 = vrot.lane.b32.xlu0 %v594, 64
    %v657 = vpop.permute.xlu0 %656
    %v659 = vsel %vm135, %v655, 0
    %v662 = vsel %vm200, %v657, 0
    %664 = vmatprep.subr.bf16.mxu0 0
    %665 = vmatpush1.bf16.msra.mxu0 %v662
    %666 = vmatprep.subr.bf16.mxu0 0
    %667 = vmatpush1.bf16.msra.mxu0 0
    %668 = vmatprep.subr.bf16.mxu0 0
    %669 = vmatpush1.bf16.msra.mxu0 0
    %670 = vmatprep.subr.bf16.mxu0 0
    %671 = vmatpush1.bf16.msra.mxu0 0
    %672 = vmatprep.subr.bf16.mxu0 0
    %673 = vmatpush1.bf16.msra.mxu0 0
    %674 = vmatprep.subr.bf16.mxu0 0
    %675 = vmatpush1.bf16.msra.mxu0 0
    %676 = vmatprep.subr.bf16.mxu0 0
    %677 = vmatpush1.bf16.msra.mxu0 0
    %678 = vmatprep.subr.bf16.mxu0 0
    %679 = vmatpush1.bf16.msra.mxu0 0
    %680 = vmatprep.subr.bf16.mxu0 0
    %681 = vmatpush1.bf16.msra.mxu0 0
    %682 = vmatprep.subr.bf16.mxu0 0
    %683 = vmatpush1.bf16.msra.mxu0 0
    %684 = vmatprep.subr.bf16.mxu0 0
    %685 = vmatpush1.bf16.msra.mxu0 0
    %686 = vmatprep.subr.bf16.mxu0 0
    %687 = vmatpush1.bf16.msra.mxu0 0
    %688 = vmatprep.subr.bf16.mxu0 0
    %689 = vmatpush1.bf16.msra.mxu0 0
    %690 = vmatprep.subr.bf16.mxu0 0
    %691 = vmatpush1.bf16.msra.mxu0 0
    %692 = vmatprep.subr.bf16.mxu0 0
    %693 = vmatpush1.bf16.msra.mxu0 0
    %694 = vmatprep.subr.bf16.mxu0 0
    %695 = vmatpush1.bf16.msra.mxu0 0
    %696 = vmatprep.mubr.bf16.mxu0 0
    %697 = vmatmul.mubr.bf16.gmra.mrb[0].mxu0 %v659
    %v698 = vpop.f32.mrb[0].mxu0
    %v699 = vadd.f32 0.0, %v698
    %v700 = vpop.f32.mrb[0].mxu0
    %v701 = vpop.f32.mrb[0].mxu0
    %v702 = vpop.f32.mrb[0].mxu0
    %703 = vdwg.mxu0
    %704 = vrot.lane.b32.xlu0 %v594, 120
    %v705 = vpop.permute.xlu0 %704
    %706 = vrot.lane.b32.xlu0 %v594, 88
    %v707 = vpop.permute.xlu0 %706
    %v709 = vsel %vm135, %v705, 0
    %v712 = vsel %vm135, %v707, 0
    %714 = vmatprep.subr.bf16.mxu0 0
    %715 = vmatpush1.bf16.xpose.msra.mxu0 %v712
    %716 = vmatprep.subr.bf16.mxu0 0
    %717 = vmatpush1.bf16.xpose.msra.mxu0 0
    %718 = vmatprep.subr.bf16.mxu0 0
    %719 = vmatpush1.bf16.xpose.msra.mxu0 0
    %720 = vmatprep.subr.bf16.mxu0 0
    %721 = vmatpush1.bf16.xpose.msra.mxu0 0
    %722 = vmatprep.subr.bf16.mxu0 0
    %723 = vmatpush1.bf16.xpose.msra.mxu0 0
    %724 = vmatprep.subr.bf16.mxu0 0
    %725 = vmatpush1.bf16.xpose.msra.mxu0 0
    %726 = vmatprep.subr.bf16.mxu0 0
    %727 = vmatpush1.bf16.xpose.msra.mxu0 0
    %728 = vmatprep.subr.bf16.mxu0 0
    %729 = vmatpush1.bf16.xpose.msra.mxu0 0
    %730 = vmatprep.subr.bf16.mxu0 0
    %731 = vmatpush1.bf16.xpose.msra.mxu0 0
    %732 = vmatprep.subr.bf16.mxu0 0
    %733 = vmatpush1.bf16.xpose.msra.mxu0 0
    %734 = vmatprep.subr.bf16.mxu0 0
    %735 = vmatpush1.bf16.xpose.msra.mxu0 0
    %736 = vmatprep.subr.bf16.mxu0 0
    %737 = vmatpush1.bf16.xpose.msra.mxu0 0
    %738 = vmatprep.subr.bf16.mxu0 0
    %739 = vmatpush1.bf16.xpose.msra.mxu0 0
    %740 = vmatprep.subr.bf16.mxu0 0
    %741 = vmatpush1.bf16.xpose.msra.mxu0 0
    %742 = vmatprep.subr.bf16.mxu0 0
    %743 = vmatpush1.bf16.xpose.msra.mxu0 0
    %744 = vmatprep.subr.bf16.mxu0 0
    %745 = vmatpush1.bf16.xpose.msra.mxu0 0
    %746 = vmatprep.mubr.bf16.mxu0 0
    %747 = vmatmul.mubr.bf16.gmra.mrb[0].mxu0 %v709
    %v748 = vpop.f32.mrb[0].mxu0
    %v749 = vadd.f32 0.0, %v748
    %v750 = vpop.f32.mrb[0].mxu0
    %v751 = vpop.f32.mrb[0].mxu0
    %v752 = vpop.f32.mrb[0].mxu0
    %753 = vdwg.mxu0
    %v754 = vmul.f32 %v749, 0.35355338
    %v755 = vsel %vm135, %v754, -inf
    %756 = vmax.xlane.f32.xlu0 %v755
    %v757 = vpop.xlane.xlu0 %756
    %v758 = vsub.f32 %v754, %v757
    %v759 = vmul.f32 %v758, 1.442695
    %v760 = vpow.pop %v759
    %v761 = vsel %vm135, %v760, 0.0
    %762 = vadd.xlane.f32.xlu0 %v761
    %v763 = vpop.xlane.xlu0 %762
    %v764 = vrcp.pop %v763
    %v765 = vmul.f32 %v760, %v764
    %v766 = vpack.c.bf16 %v765, %v765
    %767 = vrot.lane.b32.xlu0 %v594, 56
    %v768 = vpop.permute.xlu0 %767
    %v770 = vsel %vm135, %v766, 0
    %v773 = vsel %vm200, %v768, 0
    %775 = vmatprep.subr.bf16.mxu0 0
    %776 = vmatpush1.bf16.msra.mxu0 %v773
    %777 = vmatprep.subr.bf16.mxu0 0
    %778 = vmatpush1.bf16.msra.mxu0 0
    %779 = vmatprep.subr.bf16.mxu0 0
    %780 = vmatpush1.bf16.msra.mxu0 0
    %781 = vmatprep.subr.bf16.mxu0 0
    %782 = vmatpush1.bf16.msra.mxu0 0
    %783 = vmatprep.subr.bf16.mxu0 0
    %784 = vmatpush1.bf16.msra.mxu0 0
    %785 = vmatprep.subr.bf16.mxu0 0
    %786 = vmatpush1.bf16.msra.mxu0 0
    %787 = vmatprep.subr.bf16.mxu0 0
    %788 = vmatpush1.bf16.msra.mxu0 0
    %789 = vmatprep.subr.bf16.mxu0 0
    %790 = vmatpush1.bf16.msra.mxu0 0
    %791 = vmatprep.subr.bf16.mxu0 0
    %792 = vmatpush1.bf16.msra.mxu0 0
    %793 = vmatprep.subr.bf16.mxu0 0
    %794 = vmatpush1.bf16.msra.mxu0 0
    %795 = vmatprep.subr.bf16.mxu0 0
    %796 = vmatpush1.bf16.msra.mxu0 0
    %797 = vmatprep.subr.bf16.mxu0 0
    %798 = vmatpush1.bf16.msra.mxu0 0
    %799 = vmatprep.subr.bf16.mxu0 0
    %800 = vmatpush1.bf16.msra.mxu0 0
    %801 = vmatprep.subr.bf16.mxu0 0
    %802 = vmatpush1.bf16.msra.mxu0 0
    %803 = vmatprep.subr.bf16.mxu0 0
    %804 = vmatpush1.bf16.msra.mxu0 0
    %805 = vmatprep.subr.bf16.mxu0 0
    %806 = vmatpush1.bf16.msra.mxu0 0
    %807 = vmatprep.mubr.bf16.mxu0 0
    %808 = vmatmul.mubr.bf16.gmra.mrb[0].mxu0 %v770
    %v809 = vpop.f32.mrb[0].mxu0
    %v810 = vadd.f32 0.0, %v809
    %v811 = vpop.f32.mrb[0].mxu0
    %v812 = vpop.f32.mrb[0].mxu0
    %v813 = vpop.f32.mrb[0].mxu0
    %814 = vdwg.mxu0
    %815 = vrot.lane.b32.xlu0 %v594, 112
    %v816 = vpop.permute.xlu0 %815
    %817 = vrot.lane.b32.xlu0 %v594, 80
    %v818 = vpop.permute.xlu0 %817
    %v820 = vsel %vm135, %v816, 0
    %v823 = vsel %vm135, %v818, 0
    %825 = vmatprep.subr.bf16.mxu0 0
    %826 = vmatpush1.bf16.xpose.msra.mxu0 %v823
    %827 = vmatprep.subr.bf16.mxu0 0
    %828 = vmatpush1.bf16.xpose.msra.mxu0 0
    %829 = vmatprep.subr.bf16.mxu0 0
    %830 = vmatpush1.bf16.xpose.msra.mxu0 0
    %831 = vmatprep.subr.bf16.mxu0 0
    %832 = vmatpush1.bf16.xpose.msra.mxu0 0
    %833 = vmatprep.subr.bf16.mxu0 0
    %834 = vmatpush1.bf16.xpose.msra.mxu0 0
    %835 = vmatprep.subr.bf16.mxu0 0
    %836 = vmatpush1.bf16.xpose.msra.mxu0 0
    %837 = vmatprep.subr.bf16.mxu0 0
    %838 = vmatpush1.bf16.xpose.msra.mxu0 0
    %839 = vmatprep.subr.bf16.mxu0 0
    %840 = vmatpush1.bf16.xpose.msra.mxu0 0
    %841 = vmatprep.subr.bf16.mxu0 0
    %842 = vmatpush1.bf16.xpose.msra.mxu0 0
    %843 = vmatprep.subr.bf16.mxu0 0
    %844 = vmatpush1.bf16.xpose.msra.mxu0 0
    %845 = vmatprep.subr.bf16.mxu0 0
    %846 = vmatpush1.bf16.xpose.msra.mxu0 0
    %847 = vmatprep.subr.bf16.mxu0 0
    %848 = vmatpush1.bf16.xpose.msra.mxu0 0
    %849 = vmatprep.subr.bf16.mxu0 0
    %850 = vmatpush1.bf16.xpose.msra.mxu0 0
    %851 = vmatprep.subr.bf16.mxu0 0
    %852 = vmatpush1.bf16.xpose.msra.mxu0 0
    %853 = vmatprep.subr.bf16.mxu0 0
    %854 = vmatpush1.bf16.xpose.msra.mxu0 0
    %855 = vmatprep.subr.bf16.mxu0 0
    %856 = vmatpush1.bf16.xpose.msra.mxu0 0
    %857 = vmatprep.mubr.bf16.mxu0 0
    %858 = vmatmul.mubr.bf16.gmra.mrb[0].mxu0 %v820
    %v859 = vpop.f32.mrb[0].mxu0
    %v860 = vadd.f32 0.0, %v859
    %v861 = vpop.f32.mrb[0].mxu0
    %v862 = vpop.f32.mrb[0].mxu0
    %v863 = vpop.f32.mrb[0].mxu0
    %864 = vdwg.mxu0
    %v865 = vmul.f32 %v860, 0.35355338
    %v866 = vsel %vm135, %v865, -inf
    %867 = vmax.xlane.f32.xlu0 %v866
    %v868 = vpop.xlane.xlu0 %867
    %v869 = vsub.f32 %v865, %v868
    %v870 = vmul.f32 %v869, 1.442695
    %v871 = vpow.pop %v870
    %v872 = vsel %vm135, %v871, 0.0
    %873 = vadd.xlane.f32.xlu0 %v872
    %v874 = vpop.xlane.xlu0 %873
    %v875 = vrcp.pop %v874
    %v876 = vmul.f32 %v871, %v875
    %v877 = vpack.c.bf16 %v876, %v876
    %878 = vrot.lane.b32.xlu0 %v594, 48
    %v879 = vpop.permute.xlu0 %878
    %v881 = vsel %vm135, %v877, 0
    %v884 = vsel %vm200, %v879, 0
    %886 = vmatprep.subr.bf16.mxu0 0
    %887 = vmatpush1.bf16.msra.mxu0 %v884
    %888 = vmatprep.subr.bf16.mxu0 0
    %889 = vmatpush1.bf16.msra.mxu0 0
    %890 = vmatprep.subr.bf16.mxu0 0
    %891 = vmatpush1.bf16.msra.mxu0 0
    %892 = vmatprep.subr.bf16.mxu0 0
    %893 = vmatpush1.bf16.msra.mxu0 0
    %894 = vmatprep.subr.bf16.mxu0 0
    %895 = vmatpush1.bf16.msra.mxu0 0
    %896 = vmatprep.subr.bf16.mxu0 0
    %897 = vmatpush1.bf16.msra.mxu0 0
    %898 = vmatprep.subr.bf16.mxu0 0
    %899 = vmatpush1.bf16.msra.mxu0 0
    %900 = vmatprep.subr.bf16.mxu0 0
    %901 = vmatpush1.bf16.msra.mxu0 0
    %902 = vmatprep.subr.bf16.mxu0 0
    %903 = vmatpush1.bf16.msra.mxu0 0
    %904 = vmatprep.subr.bf16.mxu0 0
    %905 = vmatpush1.bf16.msra.mxu0 0
    %906 = vmatprep.subr.bf16.mxu0 0
    %907 = vmatpush1.bf16.msra.mxu0 0
    %908 = vmatprep.subr.bf16.mxu0 0
    %909 = vmatpush1.bf16.msra.mxu0 0
    %910 = vmatprep.subr.bf16.mxu0 0
    %911 = vmatpush1.bf16.msra.mxu0 0
    %912 = vmatprep.subr.bf16.mxu0 0
    %913 = vmatpush1.bf16.msra.mxu0 0
    %914 = vmatprep.subr.bf16.mxu0 0
    %915 = vmatpush1.bf16.msra.mxu0 0
    %916 = vmatprep.subr.bf16.mxu0 0
    %917 = vmatpush1.bf16.msra.mxu0 0
    %918 = vmatprep.mubr.bf16.mxu0 0
    %919 = vmatmul.mubr.bf16.gmra.mrb[0].mxu0 %v881
    %v920 = vpop.f32.mrb[0].mxu0
    %v921 = vadd.f32 0.0, %v920
    %v922 = vpop.f32.mrb[0].mxu0
    %v923 = vpop.f32.mrb[0].mxu0
    %v924 = vpop.f32.mrb[0].mxu0
    %925 = vdwg.mxu0
    %926 = vrot.lane.b32.xlu0 %v594, 104
    %v927 = vpop.permute.xlu0 %926
    %928 = vrot.lane.b32.xlu0 %v594, 72
    %v929 = vpop.permute.xlu0 %928
    %v931 = vsel %vm135, %v927, 0
    %v934 = vsel %vm135, %v929, 0
    %936 = vmatprep.subr.bf16.mxu0 0
    %937 = vmatpush1.bf16.xpose.msra.mxu0 %v934
    %938 = vmatprep.subr.bf16.mxu0 0
    %939 = vmatpush1.bf16.xpose.msra.mxu0 0
    %940 = vmatprep.subr.bf16.mxu0 0
    %941 = vmatpush1.bf16.xpose.msra.mxu0 0
    %942 = vmatprep.subr.bf16.mxu0 0
    %943 = vmatpush1.bf16.xpose.msra.mxu0 0
    %944 = vmatprep.subr.bf16.mxu0 0
    %945 = vmatpush1.bf16.xpose.msra.mxu0 0
    %946 = vmatprep.subr.bf16.mxu0 0
    %947 = vmatpush1.bf16.xpose.msra.mxu0 0
    %948 = vmatprep.subr.bf16.mxu0 0
    %949 = vmatpush1.bf16.xpose.msra.mxu0 0
    %950 = vmatprep.subr.bf16.mxu0 0
    %951 = vmatpush1.bf16.xpose.msra.mxu0 0
    %952 = vmatprep.subr.bf16.mxu0 0
    %953 = vmatpush1.bf16.xpose.msra.mxu0 0
    %954 = vmatprep.subr.bf16.mxu0 0
    %955 = vmatpush1.bf16.xpose.msra.mxu0 0
    %956 = vmatprep.subr.bf16.mxu0 0
    %957 = vmatpush1.bf16.xpose.msra.mxu0 0
    %958 = vmatprep.subr.bf16.mxu0 0
    %959 = vmatpush1.bf16.xpose.msra.mxu0 0
    %960 = vmatprep.subr.bf16.mxu0 0
    %961 = vmatpush1.bf16.xpose.msra.mxu0 0
    %962 = vmatprep.subr.bf16.mxu0 0
    %963 = vmatpush1.bf16.xpose.msra.mxu0 0
    %964 = vmatprep.subr.bf16.mxu0 0
    %965 = vmatpush1.bf16.xpose.msra.mxu0 0
    %966 = vmatprep.subr.bf16.mxu0 0
    %967 = vmatpush1.bf16.xpose.msra.mxu0 0
    %968 = vmatprep.mubr.bf16.mxu0 0
    %969 = vmatmul.mubr.bf16.gmra.mrb[0].mxu0 %v931
    %v970 = vpop.f32.mrb[0].mxu0
    %v971 = vadd.f32 0.0, %v970
    %v972 = vpop.f32.mrb[0].mxu0
    %v973 = vpop.f32.mrb[0].mxu0
    %v974 = vpop.f32.mrb[0].mxu0
    %975 = vdwg.mxu0
    %v976 = vmul.f32 %v971, 0.35355338
    %v977 = vsel %vm135, %v976, -inf
    %978 = vmax.xlane.f32.xlu0 %v977
    %v979 = vpop.xlane.xlu0 %978
    %v980 = vsub.f32 %v976, %v979
    %v981 = vmul.f32 %v980, 1.442695
    %v982 = vpow.pop %v981
    %v983 = vsel %vm135, %v982, 0.0
    %984 = vadd.xlane.f32.xlu0 %v983
    %v985 = vpop.xlane.xlu0 %984
    %v986 = vrcp.pop %v985
    %v987 = vmul.f32 %v982, %v986
    %v988 = vpack.c.bf16 %v987, %v987
    %989 = vrot.lane.b32.xlu0 %v594, 40
    %v990 = vpop.permute.xlu0 %989
    %v992 = vsel %vm135, %v988, 0
    %v995 = vsel %vm200, %v990, 0
    %997 = vmatprep.subr.bf16.mxu0 0
    %998 = vmatpush1.bf16.msra.mxu0 %v995
    %999 = vmatprep.subr.bf16.mxu0 0
    %1000 = vmatpush1.bf16.msra.mxu0 0
    %1001 = vmatprep.subr.bf16.mxu0 0
    %1002 = vmatpush1.bf16.msra.mxu0 0
    %1003 = vmatprep.subr.bf16.mxu0 0
    %1004 = vmatpush1.bf16.msra.mxu0 0
    %1005 = vmatprep.subr.bf16.mxu0 0
    %1006 = vmatpush1.bf16.msra.mxu0 0
    %1007 = vmatprep.subr.bf16.mxu0 0
    %1008 = vmatpush1.bf16.msra.mxu0 0
    %1009 = vmatprep.subr.bf16.mxu0 0
    %1010 = vmatpush1.bf16.msra.mxu0 0
    %1011 = vmatprep.subr.bf16.mxu0 0
    %1012 = vmatpush1.bf16.msra.mxu0 0
    %1013 = vmatprep.subr.bf16.mxu0 0
    %1014 = vmatpush1.bf16.msra.mxu0 0
    %1015 = vmatprep.subr.bf16.mxu0 0
    %1016 = vmatpush1.bf16.msra.mxu0 0
    %1017 = vmatprep.subr.bf16.mxu0 0
    %1018 = vmatpush1.bf16.msra.mxu0 0
    %1019 = vmatprep.subr.bf16.mxu0 0
    %1020 = vmatpush1.bf16.msra.mxu0 0
    %1021 = vmatprep.subr.bf16.mxu0 0
    %1022 = vmatpush1.bf16.msra.mxu0 0
    %1023 = vmatprep.subr.bf16.mxu0 0
    %1024 = vmatpush1.bf16.msra.mxu0 0
    %1025 = vmatprep.subr.bf16.mxu0 0
    %1026 = vmatpush1.bf16.msra.mxu0 0
    %1027 = vmatprep.subr.bf16.mxu0 0
    %1028 = vmatpush1.bf16.msra.mxu0 0
    %1029 = vmatprep.mubr.bf16.mxu0 0
    %1030 = vmatmul.mubr.bf16.gmra.mrb[0].mxu0 %v992
    %v1031 = vpop.f32.mrb[0].mxu0
    %v1032 = vadd.f32 0.0, %v1031
    %v1033 = vpop.f32.mrb[0].mxu0
    %v1034 = vpop.f32.mrb[0].mxu0
    %v1035 = vpop.f32.mrb[0].mxu0
    %1036 = vdwg.mxu0
    %1038 = vrot.lane.b32.xlu0 %v810, 8
    %v1039 = vpop.permute.xlu0 %1038
    %1042 = vrot.lane.b32.xlu0 %v921, 16
    %v1043 = vpop.permute.xlu0 %1042
    %1046 = vrot.lane.b32.xlu0 %v1032, 24
    %v1047 = vpop.permute.xlu0 %1046
    %v1049 = vsel %vm135, %v699, %v1039
    %v1050 = vsel %vm590, %v1049, %v1043
    %v1051 = vsel %vm592, %v1050, %v1047
    %v1052 = vpack.c.bf16 %v1051, %v593
    %v1053 = vld [vmem:[%s2] sm:$0xf]
    %v1054 = vld [vmem:[%s2 + $0x4] sm:$0xf]
    %v1055 = vld [vmem:[%s2 + $0x8] sm:$0xf]
    %v1056 = vld [vmem:[%s2 + $0xc] sm:$0xf]
    %v1057 = vld [vmem:[%s4] sm:$0x1]
    %v1059 = vlaneseq
    %v1060 = vshrl.u32 %v1059, 7
    %v1061 = vsub.s32 0, %v1060
    %v1062 = vrot.slane %v1057, %v1061
    %v1068 = vunpack.c.l.b16 %v1053
    %v1069 = vunpack.c.l.b16 %v1054
    %v1070 = vunpack.c.l.b16 %v1055
    %v1071 = vunpack.c.l.b16 %v1056
    %v1072 = vpack.c.b16 %v1069, %v1068
    %v1073 = vpack.c.b16 %v1071, %v1070
    %v1077 = vsel %vm86, %v1052, 0
    %1079 = vmatprep.subr.bf16.mxu0 0
    %1080 = vmatpush1.bf16.msra.mxu0 %v1072
    %1081 = vmatprep.subr.bf16.mxu0 0
    %1082 = vmatpush1.bf16.msra.mxu0 %v1073
    %1083 = vmatprep.subr.bf16.mxu0 0
    %1084 = vmatpush1.bf16.msra.mxu0 0
    %1085 = vmatprep.subr.bf16.mxu0 0
    %1086 = vmatpush1.bf16.msra.mxu0 0
    %1087 = vmatprep.subr.bf16.mxu0 0
    %1088 = vmatpush1.bf16.msra.mxu0 0
    %1089 = vmatprep.subr.bf16.mxu0 0
    %1090 = vmatpush1.bf16.msra.mxu0 0
    %1091 = vmatprep.subr.bf16.mxu0 0
    %1092 = vmatpush1.bf16.msra.mxu0 0
    %1093 = vmatprep.subr.bf16.mxu0 0
    %1094 = vmatpush1.bf16.msra.mxu0 0
    %1095 = vmatprep.subr.bf16.mxu0 0
    %1096 = vmatpush1.bf16.msra.mxu0 0
    %1097 = vmatprep.subr.bf16.mxu0 0
    %1098 = vmatpush1.bf16.msra.mxu0 0
    %1099 = vmatprep.subr.bf16.mxu0 0
    %1100 = vmatpush1.bf16.msra.mxu0 0
    %1101 = vmatprep.subr.bf16.mxu0 0
    %1102 = vmatpush1.bf16.msra.mxu0 0
    %1103 = vmatprep.subr.bf16.mxu0 0
    %1104 = vmatpush1.bf16.msra.mxu0 0
    %1105 = vmatprep.subr.bf16.mxu0 0
    %1106 = vmatpush1.bf16.msra.mxu0 0
    %1107 = vmatprep.subr.bf16.mxu0 0
    %1108 = vmatpush1.bf16.msra.mxu0 0
    %1109 = vmatprep.subr.bf16.mxu0 0
    %1110 = vmatpush1.bf16.msra.mxu0 0
    %1111 = vmatprep.mubr.bf16.mxu0 0
    %1112 = vmatmul.mubr.bf16.gmra.mrb[0].mxu0 %v1077
    %v1113 = vpop.f32.mrb[0].mxu0
    %v1114 = vadd.f32 %v1062, %v1113
    %v1115 = vpop.f32.mrb[0].mxu0
    %v1116 = vpop.f32.mrb[0].mxu0
    %v1117 = vadd.f32 %v1062, %v1116
    %v1118 = vpop.f32.mrb[0].mxu0
    %1119 = vdwg.mxu0
    %v1120 = vadd.f32 %v60, %v1114
    %v1121 = vadd.f32 %v61, %v1117
    %v1122 = vld [vmem:[%s5] sm:$0x1]
    %v1123 = vld [vmem:[%s6] sm:$0x1]
    %v1124 = vsel %vm86, %v1120, 0.0
    %1125 = vadd.xlane.f32.xlu0 %v1124
    %v1126 = vpop.xlane.xlu0 %1125
    %v1127 = vsel %vm86, %v1121, 0.0
    %1128 = vadd.xlane.f32.xlu0 %v1127
    %v1129 = vpop.xlane.xlu0 %1128
    %v1130 = vrcp.pop 32.0
    %v1131 = vmul.f32 %v1126, %v1130
    %v1132 = vmul.f32 %v1129, %v1130
    %v1133 = vsub.f32 %v1120, %v1131
    %v1134 = vsub.f32 %v1121, %v1132
    %v1135 = vmul.f32 %v1133, %v1133
    %v1136 = vmul.f32 %v1134, %v1134
    %v1137 = vsel %vm86, %v1135, 0.0
    %1138 = vadd.xlane.f32.xlu0 %v1137
    %v1139 = vpop.xlane.xlu0 %1138
    %v1140 = vsel %vm86, %v1136, 0.0
    %1141 = vadd.xlane.f32.xlu0 %v1140
    %v1142 = vpop.xlane.xlu0 %1141
    %v1143 = vmul.f32 %v1139, %v1130
    %v1144 = vmul.f32 %v1142, %v1130
    %v1145 = vadd.f32 %v1143, 1e-05
    %v1146 = vadd.f32 %v1144, 1e-05
    %v1147 = vrsqrt.pop %v1145
    %v1148 = vrsqrt.pop %v1146
    %v1149 = vmul.f32 %v1133, %v1147
    %v1150 = vmul.f32 %v1134, %v1148
    %v1152 = vlaneseq
    %v1153 = vshrl.u32 %v1152, 7
    %v1154 = vsub.s32 0, %v1153
    %v1155 = vrot.slane %v1122, %v1154
    %v1157 = vmul.f32 %v1149, %v1155
    %v1158 = vmul.f32 %v1150, %v1155
    %v1160 = vlaneseq
    %v1161 = vshrl.u32 %v1160, 7
    %v1162 = vsub.s32 0, %v1161
    %v1163 = vrot.slane %v1123, %v1162
    %v1165 = vadd.f32 %v1157, %v1163
    %v1166 = vadd.f32 %v1158, %v1163
    %v1167 = vpack.c.bf16 %v1166, %v1165
    %v1168 = vld [vmem:[#allocation2] sm:$0xf]
    %v1169 = vld [vmem:[#allocation2 + $0x4] sm:$0xf]
    %v1170 = vld [vmem:[#allocation2 + $0x8] sm:$0xf]
    %v1171 = vld [vmem:[#allocation2 + $0xc] sm:$0xf]
    %v1172 = vld [vmem:[%s8] sm:$0x1]
    %v1174 = vlaneseq
    %v1175 = vshrl.u32 %v1174, 7
    %v1176 = vsub.s32 0, %v1175
    %v1177 = vrot.slane %v1172, %v1176
    %v1183 = vunpack.c.l.b16 %v1168
    %v1184 = vunpack.c.l.b16 %v1169
    %v1185 = vunpack.c.l.b16 %v1170
    %v1186 = vunpack.c.l.b16 %v1171
    %v1187 = vpack.c.b16 %v1184, %v1183
    %v1188 = vpack.c.b16 %v1186, %v1185
    %v1192 = vsel %vm86, %v1167, 0
    %1194 = vmatprep.subr.bf16.mxu0 0
    %1195 = vmatpush1.bf16.msra.mxu0 %v1187
    %1196 = vmatprep.subr.bf16.mxu0 0
    %1197 = vmatpush1.bf16.msra.mxu0 %v1188
    %1198 = vmatprep.subr.bf16.mxu0 0
    %1199 = vmatpush1.bf16.msra.mxu0 0
    %1200 = vmatprep.subr.bf16.mxu0 0
    %1201 = vmatpush1.bf16.msra.mxu0 0
    %1202 = vmatprep.subr.bf16.mxu0 0
    %1203 = vmatpush1.bf16.msra.mxu0 0
    %1204 = vmatprep.subr.bf16.mxu0 0
    %1205 = vmatpush1.bf16.msra.mxu0 0
    %1206 = vmatprep.subr.bf16.mxu0 0
    %1207 = vmatpush1.bf16.msra.mxu0 0
    %1208 = vmatprep.subr.bf16.mxu0 0
    %1209 = vmatpush1.bf16.msra.mxu0 0
    %1210 = vmatprep.subr.bf16.mxu0 0
    %1211 = vmatpush1.bf16.msra.mxu0 0
    %1212 = vmatprep.subr.bf16.mxu0 0
    %1213 = vmatpush1.bf16.msra.mxu0 0
    %1214 = vmatprep.subr.bf16.mxu0 0
    %1215 = vmatpush1.bf16.msra.mxu0 0
    %1216 = vmatprep.subr.bf16.mxu0 0
    %1217 = vmatpush1.bf16.msra.mxu0 0
    %1218 = vmatprep.subr.bf16.mxu0 0
    %1219 = vmatpush1.bf16.msra.mxu0 0
    %1220 = vmatprep.subr.bf16.mxu0 0
    %1221 = vmatpush1.bf16.msra.mxu0 0
    %1222 = vmatprep.subr.bf16.mxu0 0
    %1223 = vmatpush1.bf16.msra.mxu0 0
    %1224 = vmatprep.subr.bf16.mxu0 0
    %1225 = vmatpush1.bf16.msra.mxu0 0
    %1226 = vmatprep.mubr.bf16.mxu0 0
    %1227 = vmatmul.mubr.bf16.gmra.mrb[0].mxu0 %v1192
    %v1228 = vpop.f32.mrb[0].mxu0
    %v1229 = vadd.f32 %v1177, %v1228
    %v1230 = vpop.f32.mrb[0].mxu0
    %v1231 = vpop.f32.mrb[0].mxu0
    %v1232 = vadd.f32 %v1177, %v1231
    %v1233 = vpop.f32.mrb[0].mxu0
    %1234 = vdwg.mxu0
    %v1235 = vmul.f32 %v1229, 0.5
    %v1236 = vmul.f32 %v1232, 0.5
    %v1237 = vmul.f32 %v1229, 0.70710677
    %v1238 = vmul.f32 %v1232, 0.70710677
    %v1239 = verf.f32.pop %v1237
    %v1240 = verf.f32.pop %v1238
    %v1241 = vadd.f32 %v1239, 1.0
    %v1242 = vadd.f32 %v1240, 1.0
    %v1243 = vmul.f32 %v1235, %v1241
    %v1244 = vmul.f32 %v1236, %v1242
    %v1245 = vpack.c.bf16 %v1244, %v1243
    %v1246 = vld [vmem:[%s9] sm:$0xf]
    %v1247 = vld [vmem:[%s9 + $0x4] sm:$0xf]
    %v1248 = vld [vmem:[%s9 + $0x8] sm:$0xf]
    %v1249 = vld [vmem:[%s9 + $0xc] sm:$0xf]
    %v1250 = vld [vmem:[%s9 + $0x10] sm:$0xf]
    %v1251 = vld [vmem:[%s9 + $0x14] sm:$0xf]
    %v1252 = vld [vmem:[%s9 + $0x18] sm:$0xf]
    %v1253 = vld [vmem:[%s9 + $0x1c] sm:$0xf]
    %v1254 = vld [vmem:[%s10] sm:$0x1]
    %v1256 = vlaneseq
    %v1257 = vshrl.u32 %v1256, 7
    %v1258 = vsub.s32 0, %v1257
    %v1259 = vrot.slane %v1254, %v1258
    %v1269 = vunpack.c.l.b16 %v1246
    %v1270 = vunpack.c.l.b16 %v1247
    %v1271 = vunpack.c.l.b16 %v1248
    %v1272 = vunpack.c.l.b16 %v1249
    %v1273 = vunpack.c.l.b16 %v1250
    %v1274 = vunpack.c.l.b16 %v1251
    %v1275 = vunpack.c.l.b16 %v1252
    %v1276 = vunpack.c.l.b16 %v1253
    %v1277 = vpack.c.b16 %v1270, %v1269
    %v1278 = vpack.c.b16 %v1272, %v1271
    %v1279 = vpack.c.b16 %v1274, %v1273
    %v1280 = vpack.c.b16 %v1276, %v1275
    %vm1285 = vcmask 523264
    %v1287 = vsel %vm1285, %v1245, 0
    %1289 = vmatprep.subr.bf16.mxu0 0
    %1290 = vmatpush1.bf16.msra.mxu0 %v1277
    %1291 = vmatprep.subr.bf16.mxu0 0
    %1292 = vmatpush1.bf16.msra.mxu0 %v1278
    %1293 = vmatprep.subr.bf16.mxu0 0
    %1294 = vmatpush1.bf16.msra.mxu0 %v1279
    %1295 = vmatprep.subr.bf16.mxu0 0
    %1296 = vmatpush1.bf16.msra.mxu0 %v1280
    %1297 = vmatprep.subr.bf16.mxu0 0
    %1298 = vmatpush1.bf16.msra.mxu0 0
    %1299 = vmatprep.subr.bf16.mxu0 0
    %1300 = vmatpush1.bf16.msra.mxu0 0
    %1301 = vmatprep.subr.bf16.mxu0 0
    %1302 = vmatpush1.bf16.msra.mxu0 0
    %1303 = vmatprep.subr.bf16.mxu0 0
    %1304 = vmatpush1.bf16.msra.mxu0 0
    %1305 = vmatprep.subr.bf16.mxu0 0
    %1306 = vmatpush1.bf16.msra.mxu0 0
    %1307 = vmatprep.subr.bf16.mxu0 0
    %1308 = vmatpush1.bf16.msra.mxu0 0
    %1309 = vmatprep.subr.bf16.mxu0 0
    %1310 = vmatpush1.bf16.msra.mxu0 0
    %1311 = vmatprep.subr.bf16.mxu0 0
    %1312 = vmatpush1.bf16.msra.mxu0 0
    %1313 = vmatprep.subr.bf16.mxu0 0
    %1314 = vmatpush1.bf16.msra.mxu0 0
    %1315 = vmatprep.subr.bf16.mxu0 0
    %1316 = vmatpush1.bf16.msra.mxu0 0
    %1317 = vmatprep.subr.bf16.mxu0 0
    %1318 = vmatpush1.bf16.msra.mxu0 0
    %1319 = vmatprep.subr.bf16.mxu0 0
    %1320 = vmatpush1.bf16.msra.mxu0 0
    %1321 = vmatprep.mubr.bf16.mxu0 0
    %1322 = vmatmul.mubr.bf16.gmra.mrb[0].mxu0 %v1287
    %v1323 = vpop.f32.mrb[0].mxu0
    %v1324 = vadd.f32 %v1259, %v1323
    %v1325 = vpop.f32.mrb[0].mxu0
    %v1326 = vpop.f32.mrb[0].mxu0
    %v1327 = vadd.f32 %v1259, %v1326
    %v1328 = vpop.f32.mrb[0].mxu0
    %1329 = vdwg.mxu0
    %v1330 = vadd.f32 %v1324, %v1165
    %v1331 = vadd.f32 %v1327, %v1166
    %v1332 = vld [vmem:[%s11] sm:$0x1]
    %v1333 = vld [vmem:[%s12] sm:$0x1]
    %v1334 = vsel %vm86, %v1330, 0.0
    %1335 = vadd.xlane.f32.xlu0 %v1334
    %v1336 = vpop.xlane.xlu0 %1335
    %v1337 = vsel %vm86, %v1331, 0.0
    %1338 = vadd.xlane.f32.xlu0 %v1337
    %v1339 = vpop.xlane.xlu0 %1338
    %v1340 = vmul.f32 %v1336, %v1130
    %v1341 = vmul.f32 %v1339, %v1130
    %v1342 = vsub.f32 %v1330, %v1340
    %v1343 = vsub.f32 %v1331, %v1341
    %v1344 = vmul.f32 %v1342, %v1342
    %v1345 = vmul.f32 %v1343, %v1343
    %v1346 = vsel %vm86, %v1344, 0.0
    %1347 = vadd.xlane.f32.xlu0 %v1346
    %v1348 = vpop.xlane.xlu0 %1347
    %v1349 = vsel %vm86, %v1345, 0.0
    %1350 = vadd.xlane.f32.xlu0 %v1349
    %v1351 = vpop.xlane.xlu0 %1350
    %v1352 = vmul.f32 %v1348, %v1130
    %v1353 = vmul.f32 %v1351, %v1130
    %v1354 = vadd.f32 %v1352, 1e-05
    %v1355 = vadd.f32 %v1353, 1e-05
    %v1356 = vrsqrt.pop %v1354
    %v1357 = vrsqrt.pop %v1355
    %v1358 = vmul.f32 %v1342, %v1356
    %v1359 = vmul.f32 %v1343, %v1357
    %v1361 = vlaneseq
    %v1362 = vshrl.u32 %v1361, 7
    %v1363 = vsub.s32 0, %v1362
    %v1364 = vrot.slane %v1332, %v1363
    %v1366 = vmul.f32 %v1358, %v1364
    %v1367 = vmul.f32 %v1359, %v1364
    %v1369 = vlaneseq
    %v1370 = vshrl.u32 %v1369, 7
    %v1371 = vsub.s32 0, %v1370
    %v1372 = vrot.slane %v1333, %v1371
    %v1374 = vadd.f32 %v1366, %v1372
    %v1375 = vadd.f32 %v1367, %v1372
    %1376 = vst.msk [vmem:[#allocation5] sm:$0xff] %vm86, %v1374
    %1377 = vst.msk [vmem:[#allocation5 + $0x8] sm:$0xff] %vm86, %v1375
    // Predicated region
    $region58: #{tpu_custom_call.1} parent=1 // pred_check
      _
    $region59: #{tpu_custom_call.1} parent=1 // pred_check_branch
      %1379 = sbr.rel (0) target = $region61
    $region60: #{tpu_custom_call.1} parent=1 // pred_region
      %s1381 = ssub.s32 256, 256
      %1382 = vsyncadd [#allocation4], %s1381
      %s1383 = sshll.u32 [#allocation5], 4
      %s1384 = int_to_ptr.vmem [resolvable:$true] %s1383
      %1389 = dma.vmem_to_hbm [thread:$0]  %s1384, 256, %s13, [#allocation4], 128, 128, 8
    $region61: #{tpu_custom_call.1} parent=1 // pred_fallthru
      _
    // Predicated region
    $region62: #{tpu_custom_call.1} parent=1 // pred_check
      _
    $region63: #{tpu_custom_call.1} parent=1 // pred_check_branch
      %1391 = sbr.rel (0) target = $region65
    $region64: #{tpu_custom_call.1} parent=1 // pred_region
      %1392 = dma.done [#allocation4], 256
    $region65: #{tpu_custom_call.1} parent=1 // pred_fallthru
      _
    %1393 = vsyncpa [#allocation3], 1
    %1394 = vsyncpa [#allocation4], 1

</llo_original>
